<compile_context>
chip_gen: v7x
topology: tpu7x:2x2x1
jax: 0.10.0
libtpu: 0.0.40
codegen_flags: <defaults>
</compile_context>

<pallas_src>
import functools

import jax
import jax.numpy as jnp
from jax.experimental import pallas as pl
from jax.experimental.pallas import tpu as pltpu


# ----------------------------------------------------------------------------
# Fused ResBlock kernel (nb images packed per grid step)
# ----------------------------------------------------------------------------
def _resblock_kernel(w_ref, s_ref, x_ref, o_ref, col_ref, *,
                     num_layers, H, W, use_oa):
    # w_ref : VMEM (L, R, 9*R) f32 -- BN-folded conv weights, block-diagonal
    #         over the nb images packed into the R = nb*C tile rows.
    #         Column layout: t*R + row_in, with t = dy*3 + dx.
    # s_ref : VMEM (L, R, 1)  f32 -- folded shift = b*scale + beta - mean*scale.
    # x_ref : VMEM (R, H*W) input tile (row r = image r//C, channel r%C,
    #         flattened H*W on the lane axis).
    # o_ref : VMEM (R, H*W) output tile.
    # col_ref: VMEM (9*R, H*W) f32 scratch -- im2col buffer of the 9 taps.
    R = x_ref.shape[0]
    HW = H * W

    # Lane-column (w coordinate) of every element; patches the reflect-W
    # boundary after the wrapping lane rolls.
    wcol = jax.lax.broadcasted_iota(jnp.int32, (1, HW), 1) % W
    is_left = wcol == 0
    is_right = wcol == (W - 1)

    x = x_ref[...].astype(jnp.float32)            # residual input, (R, HW)
    h = x
    for l in range(num_layers):
        # --- build im2col: 9 circular-H / reflect-W padded taps -------------
        for dy in range(3):
            # Circular pad along H == roll of each row's flattened H*W axis by
            # a multiple of W.  Rows are rolled independently, so the wrap
            # never bleeds across images/channels.  The +/-1 lane shifts are
            # composed with the dy shift (three independent rolls, no chain).
            sh = (W * (1 - dy)) % HW
            r0 = pltpu.roll(h, sh, axis=1) if sh else h       # x[h', w]
            rp = pltpu.roll(h, (sh + 1) % HW, axis=1)         # x[h', w-1] (wraps at w==0)
            rm = pltpu.roll(h, (sh - 1) % HW, axis=1)         # x[h', w+1] (wraps at w==W-1)
            base = dy * 3
            # dx = 0 needs x[h', w-1]; reflect: x[h', 1] at w == 0
            col_ref[(base + 0) * R:(base + 1) * R, :] = jnp.where(is_left, rm, rp)
            # dx = 1: center column
            col_ref[(base + 1) * R:(base + 2) * R, :] = r0
            # dx = 2 needs x[h', w+1]; reflect: x[h', W-2] at w == W - 1
            col_ref[(base + 2) * R:(base + 3) * R, :] = jnp.where(is_right, rp, rm)

        # --- conv3x3 + bias + BatchNorm as one MXU matmul --------------------
        acc = jnp.dot(w_ref[l], col_ref[...],
                      preferred_element_type=jnp.float32,
                      precision=jax.lax.Precision.HIGHEST) + s_ref[l]

        # LeakyReLU(0.01) on all but the last layer.
        h = jnp.where(acc >= 0, acc, 0.01 * acc) if l < num_layers - 1 else acc

    out = x + h                                    # residual: out = x + block(x)
    if use_oa:                                     # optional output LeakyReLU
        out = jnp.where(out >= 0, out, 0.01 * out)
    o_ref[...] = out.astype(o_ref.dtype)           # single full-tile store


# ----------------------------------------------------------------------------
# Host-side folding of conv bias + eval-mode BatchNorm into one weight/shift
# ----------------------------------------------------------------------------
def _fold_weights(layer_params, C, nb, eps):
    R = nb * C
    eye_nb = jnp.eye(nb, dtype=jnp.float32)
    w_layers, s_layers = [], []
    for p in layer_params:
        scale = p['gamma'] / jnp.sqrt(p['var'] + eps)                   # (C,)
        shift = p['b'] * scale + p['beta'] - p['mean'] * scale          # (C,)
        ws = p['w_oihw'].astype(jnp.float32) * scale[:, None, None, None]  # (co,ci,ky,kx)
        taps = jnp.transpose(ws, (2, 3, 0, 1)).reshape(9, C, C)         # (t, co, ci)
        # big[n, co, t, m, ci] = taps[t, co, ci] * (n == m)  (block-diag over images)
        big = jnp.einsum('tij,nm->nitmj', taps, eye_nb)
        w_layers.append(big.reshape(R, 9 * R))        # row n*C+co, col t*R + m*C + ci
        s_layers.append(jnp.tile(shift, nb)[:, None])                   # (R, 1)
    return (jnp.stack(w_layers).astype(jnp.float32),
            jnp.stack(s_layers).astype(jnp.float32))


# ----------------------------------------------------------------------------
# Wrapper: NCHW in / NCHW out, all layers in one pallas_call
# ----------------------------------------------------------------------------
def resblock_forward(x_nchw, layer_params, use_oa, eps=1e-5):
    N, C, H, W = x_nchw.shape
    assert W >= 2, "reflect padding along W requires W >= 2"
    HW = H * W
    L = len(layer_params)

    # Pack nb images per grid step so the tile has R = nb*C rows (fills the 8
    # vreg sublanes).  For larger N this still leaves >= 2 "parallel" steps
    # (both v7x TCs fed) while amortizing per-step overhead on v5e/v6e.
    nb_target = max(1, -(-8 // C))           # ceil(8 / C)
    nb = 1
    for cand in range(min(N, nb_target), 0, -1):
        if N % cand == 0:
            nb = cand
            break
    R = nb * C
    steps = N // nb

    w_full, s_full = _fold_weights(layer_params, C, nb, eps)  # (L,R,9R), (L,R,1)

    # Free (contiguous) reshape: each row is one image-channel's flattened
    # H*W plane -> lane-dense last axis (256 = 2*128 here -> unmasked stores).
    x2 = x_nchw.reshape(N * C, HW)

    kern = functools.partial(_resblock_kernel, num_layers=L, H=H, W=W,
                             use_oa=use_oa)
    out2 = pl.pallas_call(
        kern,
        out_shape=jax.ShapeDtypeStruct((N * C, HW), x_nchw.dtype),
        grid=(steps,),
        in_specs=[
            pl.BlockSpec((L, R, 9 * R), lambda i: (0, 0, 0)),   # folded weights
            pl.BlockSpec((L, R, 1), lambda i: (0, 0, 0)),       # folded shifts
            pl.BlockSpec((R, HW), lambda i: (i, 0)),            # activation tile
        ],
        out_specs=pl.BlockSpec((R, HW), lambda i: (i, 0)),
        scratch_shapes=[pltpu.VMEM((9 * R, HW), jnp.float32)],  # im2col buffer
        compiler_params=pltpu.CompilerParams(
            dimension_semantics=("parallel",),
            vmem_limit_bytes=32 * 1024 * 1024),
    )(w_full, s_full, x2)
    return out2.reshape(N, C, H, W)


# ----------------------------------------------------------------------------
# Pure-JAX reference (XLA conv) for a correctness check
# ----------------------------------------------------------------------------
def resblock_reference(x_nchw, layer_params, use_oa, eps=1e-5):
    h = x_nchw
    L = len(layer_params)
    for i, p in enumerate(layer_params):
        hp = jnp.pad(h, ((0, 0), (0, 0), (1, 1), (0, 0)), mode='wrap')      # circular H
        hp = jnp.pad(hp, ((0, 0), (0, 0), (0, 0), (1, 1)), mode='reflect')  # reflect W
        scale = p['gamma'] / jnp.sqrt(p['var'] + eps)
        shift = p['beta'] - p['mean'] * scale
        y = jax.lax.conv_general_dilated(
            hp, p['w_oihw'], (1, 1), 'VALID',
            dimension_numbers=('NCHW', 'OIHW', 'NCHW'),
            precision=jax.lax.Precision.HIGHEST)
        y = y + p['b'][None, :, None, None]
        y = y * scale[None, :, None, None] + shift[None, :, None, None]
        if i < L - 1:
            y = jnp.where(y >= 0, y, 0.01 * y)
        h = y
    out = x_nchw + h
    if use_oa:
        out = jnp.where(out >= 0, out, 0.01 * out)
    return out


if __name__ == "__main__":
    # ResBlock(num_channels=4, num_layers=2, padding_mode=None, use_oa=True)
    N, C, H, W = 2, 4, 16, 16
    num_layers = 2
    use_oa = True
    eps = 1e-5

    key = jax.random.PRNGKey(0)
    key, kx = jax.random.split(key)
    x = jax.random.normal(kx, (N, C, H, W), jnp.float32)

    layer_params = []
    for _ in range(num_layers):
        key, k1, k2, k3, k4, k5 = jax.random.split(key, 6)
        layer_params.append(dict(
            w_oihw=0.1 * jax.random.normal(k1, (C, C, 3, 3), jnp.float32),
            b=0.1 * jax.random.normal(k2, (C,), jnp.float32),
            gamma=1.0 + 0.1 * jax.random.normal(k3, (C,), jnp.float32),
            beta=0.1 * jax.random.normal(k4, (C,), jnp.float32),
            mean=0.1 * jax.random.normal(k5, (C,), jnp.float32),
            var=jnp.ones((C,), jnp.float32),
        ))

    out = jax.block_until_ready(resblock_forward(x, layer_params, use_oa, eps))
    ref = jax.block_until_ready(resblock_reference(x, layer_params, use_oa, eps))

    assert out.shape == (N, C, H, W)
    max_err = float(jnp.max(jnp.abs(out - ref)))
    assert jnp.allclose(out, ref, atol=1e-3, rtol=1e-3), f"max abs err {max_err}"

    print("KERNEL_OK")
</pallas_src>

<mosaic_0001>
module attributes {stable_mosaic.version = 11 : i64} {
  func.func @_resblock_kernel(%arg0: i32, %arg1: memref<2x8x72xf32, #tpu.memory_space<vmem>>, %arg2: memref<2x8x1xf32, #tpu.memory_space<vmem>>, %arg3: memref<8x256xf32, #tpu.memory_space<vmem>>, %arg4: memref<8x256xf32, #tpu.memory_space<vmem>>, %arg5: memref<72x256xf32, #tpu.memory_space<vmem>>) attributes {dimension_semantics = [#tpu.dimension_semantics<parallel>], iteration_bounds = array<i64: 1>, scalar_prefetch = 0 : i64, scratch_operands = 1 : i64, tpu.core_type = #tpu.core_type<tc>, window_params = [{pipeline_mode = #tpu.pipeline_mode<synchronous>, transform_indices = @transform_0, window_bounds = array<i64: 2, 8, 72>}, {pipeline_mode = #tpu.pipeline_mode<synchronous>, transform_indices = @transform_1, window_bounds = array<i64: 2, 8, 1>}, {transform_indices = @transform_2, window_bounds = array<i64: 8, 256>}, {transform_indices = @transform_3, window_bounds = array<i64: 8, 256>}]} {
    %0 = tpu.iota {dimensions = array<i32: 1>} : vector<1x256xi32>
    %c16_i32 = arith.constant 16 : i32
    %c0_i32 = arith.constant 0 : i32
    %1 = arith.cmpi eq, %c16_i32, %c0_i32 : i32
    %c1_i32 = arith.constant 1 : i32
    %2 = arith.select %1, %c1_i32, %c16_i32 : i32
    %3 = vector.broadcast %2 : i32 to vector<1x256xi32>
    %4 = arith.remsi %0, %3 : vector<1x256xi32>
    %c0_i32_0 = arith.constant 0 : i32
    %5 = vector.broadcast %c0_i32_0 : i32 to vector<1x256xi32>
    %6 = arith.cmpi ne, %4, %5 : vector<1x256xi32>
    %c0_i32_1 = arith.constant 0 : i32
    %7 = vector.broadcast %c0_i32_1 : i32 to vector<1x256xi32>
    %8 = arith.cmpi slt, %4, %7 : vector<1x256xi32>
    %c0_i32_2 = arith.constant 0 : i32
    %9 = arith.cmpi slt, %2, %c0_i32_2 : i32
    %10 = vector.broadcast %9 : i1 to vector<1x256xi1>
    %11 = vector.broadcast %10 : vector<1x256xi1> to vector<1x256xi1>
    %12 = arith.xori %8, %11 : vector<1x256xi1>
    %13 = arith.andi %12, %6 : vector<1x256xi1>
    %14 = vector.broadcast %2 : i32 to vector<1x256xi32>
    %15 = arith.addi %4, %14 : vector<1x256xi32>
    %16 = arith.select %13, %15, %4 : vector<1x256xi1>, vector<1x256xi32>
    %c0_i32_3 = arith.constant 0 : i32
    %17 = vector.broadcast %c0_i32_3 : i32 to vector<1x256xi32>
    %18 = arith.cmpi eq, %16, %17 : vector<1x256xi32>
    %c15_i32 = arith.constant 15 : i32
    %19 = vector.broadcast %c15_i32 : i32 to vector<1x256xi32>
    %20 = arith.cmpi eq, %16, %19 : vector<1x256xi32>
    %c0 = arith.constant 0 : index
    %c0_4 = arith.constant 0 : index
    %21 = vector.load %arg3[%c0, %c0_4] : memref<8x256xf32, #tpu.memory_space<vmem>>, vector<8x256xf32>
    %c16_i32_5 = arith.constant 16 : i32
    %22 = tpu.dynamic_rotate %21 by %c16_i32_5 dim 1 : vector<8x256xf32>, i32 -> vector<8x256xf32>
    %c17_i32 = arith.constant 17 : i32
    %23 = tpu.dynamic_rotate %21 by %c17_i32 dim 1 : vector<8x256xf32>, i32 -> vector<8x256xf32>
    %c15_i32_6 = arith.constant 15 : i32
    %24 = tpu.dynamic_rotate %21 by %c15_i32_6 dim 1 : vector<8x256xf32>, i32 -> vector<8x256xf32>
    %25 = vector.shape_cast %18 : vector<1x256xi1> to vector<1x256xi1>
    %26 = vector.broadcast %25 : vector<1x256xi1> to vector<8x256xi1>
    %27 = arith.select %26, %24, %23 : vector<8x256xi1>, vector<8x256xf32>
    %c0_7 = arith.constant 0 : index
    %c0_8 = arith.constant 0 : index
    %28 = vector.load %arg5[%c0_7, %c0_8] : memref<72x256xf32, #tpu.memory_space<vmem>>, vector<8x256xf32>
    tpu.vector_store %arg5[%c0_7, %c0_8], %27 {strides = array<i32>} : memref<72x256xf32, #tpu.memory_space<vmem>>, vector<8x256xf32>,
    %c8 = arith.constant 8 : index
    %c0_9 = arith.constant 0 : index
    %29 = vector.load %arg5[%c8, %c0_9] : memref<72x256xf32, #tpu.memory_space<vmem>>, vector<8x256xf32>
    tpu.vector_store %arg5[%c8, %c0_9], %22 {strides = array<i32>} : memref<72x256xf32, #tpu.memory_space<vmem>>, vector<8x256xf32>,
    %30 = vector.shape_cast %20 : vector<1x256xi1> to vector<1x256xi1>
    %31 = vector.broadcast %30 : vector<1x256xi1> to vector<8x256xi1>
    %32 = arith.select %31, %23, %24 : vector<8x256xi1>, vector<8x256xf32>
    %c16 = arith.constant 16 : index
    %c0_10 = arith.constant 0 : index
    %33 = vector.load %arg5[%c16, %c0_10] : memref<72x256xf32, #tpu.memory_space<vmem>>, vector<8x256xf32>
    tpu.vector_store %arg5[%c16, %c0_10], %32 {strides = array<i32>} : memref<72x256xf32, #tpu.memory_space<vmem>>, vector<8x256xf32>,
    %c1_i32_11 = arith.constant 1 : i32
    %34 = tpu.dynamic_rotate %21 by %c1_i32_11 dim 1 : vector<8x256xf32>, i32 -> vector<8x256xf32>
    %c255_i32 = arith.constant 255 : i32
    %35 = tpu.dynamic_rotate %21 by %c255_i32 dim 1 : vector<8x256xf32>, i32 -> vector<8x256xf32>
    %36 = vector.shape_cast %18 : vector<1x256xi1> to vector<1x256xi1>
    %37 = vector.broadcast %36 : vector<1x256xi1> to vector<8x256xi1>
    %38 = arith.select %37, %35, %34 : vector<8x256xi1>, vector<8x256xf32>
    %c24 = arith.constant 24 : index
    %c0_12 = arith.constant 0 : index
    %39 = vector.load %arg5[%c24, %c0_12] : memref<72x256xf32, #tpu.memory_space<vmem>>, vector<8x256xf32>
    tpu.vector_store %arg5[%c24, %c0_12], %38 {strides = array<i32>} : memref<72x256xf32, #tpu.memory_space<vmem>>, vector<8x256xf32>,
    %c32 = arith.constant 32 : index
    %c0_13 = arith.constant 0 : index
    %40 = vector.load %arg5[%c32, %c0_13] : memref<72x256xf32, #tpu.memory_space<vmem>>, vector<8x256xf32>
    tpu.vector_store %arg5[%c32, %c0_13], %21 {strides = array<i32>} : memref<72x256xf32, #tpu.memory_space<vmem>>, vector<8x256xf32>,
    %41 = vector.shape_cast %20 : vector<1x256xi1> to vector<1x256xi1>
    %42 = vector.broadcast %41 : vector<1x256xi1> to vector<8x256xi1>
    %43 = arith.select %42, %34, %35 : vector<8x256xi1>, vector<8x256xf32>
    %c40 = arith.constant 40 : index
    %c0_14 = arith.constant 0 : index
    %44 = vector.load %arg5[%c40, %c0_14] : memref<72x256xf32, #tpu.memory_space<vmem>>, vector<8x256xf32>
    tpu.vector_store %arg5[%c40, %c0_14], %43 {strides = array<i32>} : memref<72x256xf32, #tpu.memory_space<vmem>>, vector<8x256xf32>,
    %c240_i32 = arith.constant 240 : i32
    %45 = tpu.dynamic_rotate %21 by %c240_i32 dim 1 : vector<8x256xf32>, i32 -> vector<8x256xf32>
    %c241_i32 = arith.constant 241 : i32
    %46 = tpu.dynamic_rotate %21 by %c241_i32 dim 1 : vector<8x256xf32>, i32 -> vector<8x256xf32>
    %c239_i32 = arith.constant 239 : i32
    %47 = tpu.dynamic_rotate %21 by %c239_i32 dim 1 : vector<8x256xf32>, i32 -> vector<8x256xf32>
    %48 = vector.shape_cast %18 : vector<1x256xi1> to vector<1x256xi1>
    %49 = vector.broadcast %48 : vector<1x256xi1> to vector<8x256xi1>
    %50 = arith.select %49, %47, %46 : vector<8x256xi1>, vector<8x256xf32>
    %c48 = arith.constant 48 : index
    %c0_15 = arith.constant 0 : index
    %51 = vector.load %arg5[%c48, %c0_15] : memref<72x256xf32, #tpu.memory_space<vmem>>, vector<8x256xf32>
    tpu.vector_store %arg5[%c48, %c0_15], %50 {strides = array<i32>} : memref<72x256xf32, #tpu.memory_space<vmem>>, vector<8x256xf32>,
    %c56 = arith.constant 56 : index
    %c0_16 = arith.constant 0 : index
    %52 = vector.load %arg5[%c56, %c0_16] : memref<72x256xf32, #tpu.memory_space<vmem>>, vector<8x256xf32>
    tpu.vector_store %arg5[%c56, %c0_16], %45 {strides = array<i32>} : memref<72x256xf32, #tpu.memory_space<vmem>>, vector<8x256xf32>,
    %53 = vector.shape_cast %20 : vector<1x256xi1> to vector<1x256xi1>
    %54 = vector.broadcast %53 : vector<1x256xi1> to vector<8x256xi1>
    %55 = arith.select %54, %46, %47 : vector<8x256xi1>, vector<8x256xf32>
    %c64 = arith.constant 64 : index
    %c0_17 = arith.constant 0 : index
    %56 = vector.load %arg5[%c64, %c0_17] : memref<72x256xf32, #tpu.memory_space<vmem>>, vector<8x256xf32>
    tpu.vector_store %arg5[%c64, %c0_17], %55 {strides = array<i32>} : memref<72x256xf32, #tpu.memory_space<vmem>>, vector<8x256xf32>,
    %c0_18 = arith.constant 0 : index
    %c0_19 = arith.constant 0 : index
    %c0_20 = arith.constant 0 : index
    %57 = vector.load %arg1[%c0_18, %c0_19, %c0_20] : memref<2x8x72xf32, #tpu.memory_space<vmem>>, vector<1x8x72xf32>
    %58 = vector.shape_cast %57 : vector<1x8x72xf32> to vector<8x72xf32>
    %c0_21 = arith.constant 0 : index
    %c0_22 = arith.constant 0 : index
    %59 = vector.load %arg5[%c0_21, %c0_22] : memref<72x256xf32, #tpu.memory_space<vmem>>, vector<72x256xf32>
    %cst = arith.constant dense<0.000000e+00> : vector<8x256xf32>
    %60 = tpu.matmul %58, %59, %cst {dimension_numbers = #tpu.dot_dimension_numbers<[1], [0], [0], [1], [0, 0, 1, 1], [], []>, precision = #tpu.contract_precision<fp32>} : vector<8x72xf32>, vector<72x256xf32>, vector<8x256xf32> -> vector<8x256xf32>
    %c0_23 = arith.constant 0 : index
    %c0_24 = arith.constant 0 : index
    %c0_25 = arith.constant 0 : index
    %61 = vector.load %arg2[%c0_23, %c0_24, %c0_25] : memref<2x8x1xf32, #tpu.memory_space<vmem>>, vector<1x8x1xf32>
    %62 = vector.shape_cast %61 : vector<1x8x1xf32> to vector<8x1xf32>
    %63 = vector.broadcast %62 : vector<8x1xf32> to vector<8x256xf32>
    %64 = arith.addf %60, %63 : vector<8x256xf32>
    %cst_26 = arith.constant 0.000000e+00 : f32
    %65 = vector.broadcast %cst_26 : f32 to vector<8x256xf32>
    %66 = arith.cmpf oge, %64, %65 : vector<8x256xf32>
    %cst_27 = arith.constant 0.00999999977 : f32
    %67 = vector.broadcast %cst_27 : f32 to vector<8x256xf32>
    %68 = arith.mulf %67, %64 : vector<8x256xf32>
    %69 = arith.select %66, %64, %68 : vector<8x256xi1>, vector<8x256xf32>
    %c16_i32_28 = arith.constant 16 : i32
    %70 = tpu.dynamic_rotate %69 by %c16_i32_28 dim 1 : vector<8x256xf32>, i32 -> vector<8x256xf32>
    %c17_i32_29 = arith.constant 17 : i32
    %71 = tpu.dynamic_rotate %69 by %c17_i32_29 dim 1 : vector<8x256xf32>, i32 -> vector<8x256xf32>
    %c15_i32_30 = arith.constant 15 : i32
    %72 = tpu.dynamic_rotate %69 by %c15_i32_30 dim 1 : vector<8x256xf32>, i32 -> vector<8x256xf32>
    %73 = vector.shape_cast %18 : vector<1x256xi1> to vector<1x256xi1>
    %74 = vector.broadcast %73 : vector<1x256xi1> to vector<8x256xi1>
    %75 = arith.select %74, %72, %71 : vector<8x256xi1>, vector<8x256xf32>
    %c0_31 = arith.constant 0 : index
    %c0_32 = arith.constant 0 : index
    %76 = vector.load %arg5[%c0_31, %c0_32] : memref<72x256xf32, #tpu.memory_space<vmem>>, vector<8x256xf32>
    tpu.vector_store %arg5[%c0_31, %c0_32], %75 {strides = array<i32>} : memref<72x256xf32, #tpu.memory_space<vmem>>, vector<8x256xf32>,
    %c8_33 = arith.constant 8 : index
    %c0_34 = arith.constant 0 : index
    %77 = vector.load %arg5[%c8_33, %c0_34] : memref<72x256xf32, #tpu.memory_space<vmem>>, vector<8x256xf32>
    tpu.vector_store %arg5[%c8_33, %c0_34], %70 {strides = array<i32>} : memref<72x256xf32, #tpu.memory_space<vmem>>, vector<8x256xf32>,
    %78 = vector.shape_cast %20 : vector<1x256xi1> to vector<1x256xi1>
    %79 = vector.broadcast %78 : vector<1x256xi1> to vector<8x256xi1>
    %80 = arith.select %79, %71, %72 : vector<8x256xi1>, vector<8x256xf32>
    %c16_35 = arith.constant 16 : index
    %c0_36 = arith.constant 0 : index
    %81 = vector.load %arg5[%c16_35, %c0_36] : memref<72x256xf32, #tpu.memory_space<vmem>>, vector<8x256xf32>
    tpu.vector_store %arg5[%c16_35, %c0_36], %80 {strides = array<i32>} : memref<72x256xf32, #tpu.memory_space<vmem>>, vector<8x256xf32>,
    %c1_i32_37 = arith.constant 1 : i32
    %82 = tpu.dynamic_rotate %69 by %c1_i32_37 dim 1 : vector<8x256xf32>, i32 -> vector<8x256xf32>
    %c255_i32_38 = arith.constant 255 : i32
    %83 = tpu.dynamic_rotate %69 by %c255_i32_38 dim 1 : vector<8x256xf32>, i32 -> vector<8x256xf32>
    %84 = vector.shape_cast %18 : vector<1x256xi1> to vector<1x256xi1>
    %85 = vector.broadcast %84 : vector<1x256xi1> to vector<8x256xi1>
    %86 = arith.select %85, %83, %82 : vector<8x256xi1>, vector<8x256xf32>
    %c24_39 = arith.constant 24 : index
    %c0_40 = arith.constant 0 : index
    %87 = vector.load %arg5[%c24_39, %c0_40] : memref<72x256xf32, #tpu.memory_space<vmem>>, vector<8x256xf32>
    tpu.vector_store %arg5[%c24_39, %c0_40], %86 {strides = array<i32>} : memref<72x256xf32, #tpu.memory_space<vmem>>, vector<8x256xf32>,
    %c32_41 = arith.constant 32 : index
    %c0_42 = arith.constant 0 : index
    %88 = vector.load %arg5[%c32_41, %c0_42] : memref<72x256xf32, #tpu.memory_space<vmem>>, vector<8x256xf32>
    tpu.vector_store %arg5[%c32_41, %c0_42], %69 {strides = array<i32>} : memref<72x256xf32, #tpu.memory_space<vmem>>, vector<8x256xf32>,
    %89 = vector.shape_cast %20 : vector<1x256xi1> to vector<1x256xi1>
    %90 = vector.broadcast %89 : vector<1x256xi1> to vector<8x256xi1>
    %91 = arith.select %90, %82, %83 : vector<8x256xi1>, vector<8x256xf32>
    %c40_43 = arith.constant 40 : index
    %c0_44 = arith.constant 0 : index
    %92 = vector.load %arg5[%c40_43, %c0_44] : memref<72x256xf32, #tpu.memory_space<vmem>>, vector<8x256xf32>
    tpu.vector_store %arg5[%c40_43, %c0_44], %91 {strides = array<i32>} : memref<72x256xf32, #tpu.memory_space<vmem>>, vector<8x256xf32>,
    %c240_i32_45 = arith.constant 240 : i32
    %93 = tpu.dynamic_rotate %69 by %c240_i32_45 dim 1 : vector<8x256xf32>, i32 -> vector<8x256xf32>
    %c241_i32_46 = arith.constant 241 : i32
    %94 = tpu.dynamic_rotate %69 by %c241_i32_46 dim 1 : vector<8x256xf32>, i32 -> vector<8x256xf32>
    %c239_i32_47 = arith.constant 239 : i32
    %95 = tpu.dynamic_rotate %69 by %c239_i32_47 dim 1 : vector<8x256xf32>, i32 -> vector<8x256xf32>
    %96 = vector.shape_cast %18 : vector<1x256xi1> to vector<1x256xi1>
    %97 = vector.broadcast %96 : vector<1x256xi1> to vector<8x256xi1>
    %98 = arith.select %97, %95, %94 : vector<8x256xi1>, vector<8x256xf32>
    %c48_48 = arith.constant 48 : index
    %c0_49 = arith.constant 0 : index
    %99 = vector.load %arg5[%c48_48, %c0_49] : memref<72x256xf32, #tpu.memory_space<vmem>>, vector<8x256xf32>
    tpu.vector_store %arg5[%c48_48, %c0_49], %98 {strides = array<i32>} : memref<72x256xf32, #tpu.memory_space<vmem>>, vector<8x256xf32>,
    %c56_50 = arith.constant 56 : index
    %c0_51 = arith.constant 0 : index
    %100 = vector.load %arg5[%c56_50, %c0_51] : memref<72x256xf32, #tpu.memory_space<vmem>>, vector<8x256xf32>
    tpu.vector_store %arg5[%c56_50, %c0_51], %93 {strides = array<i32>} : memref<72x256xf32, #tpu.memory_space<vmem>>, vector<8x256xf32>,
    %101 = vector.shape_cast %20 : vector<1x256xi1> to vector<1x256xi1>
    %102 = vector.broadcast %101 : vector<1x256xi1> to vector<8x256xi1>
    %103 = arith.select %102, %94, %95 : vector<8x256xi1>, vector<8x256xf32>
    %c64_52 = arith.constant 64 : index
    %c0_53 = arith.constant 0 : index
    %104 = vector.load %arg5[%c64_52, %c0_53] : memref<72x256xf32, #tpu.memory_space<vmem>>, vector<8x256xf32>
    tpu.vector_store %arg5[%c64_52, %c0_53], %103 {strides = array<i32>} : memref<72x256xf32, #tpu.memory_space<vmem>>, vector<8x256xf32>,
    %c1 = arith.constant 1 : index
    %c0_54 = arith.constant 0 : index
    %c0_55 = arith.constant 0 : index
    %105 = vector.load %arg1[%c1, %c0_54, %c0_55] : memref<2x8x72xf32, #tpu.memory_space<vmem>>, vector<1x8x72xf32>
    %106 = vector.shape_cast %105 : vector<1x8x72xf32> to vector<8x72xf32>
    %c0_56 = arith.constant 0 : index
    %c0_57 = arith.constant 0 : index
    %107 = vector.load %arg5[%c0_56, %c0_57] : memref<72x256xf32, #tpu.memory_space<vmem>>, vector<72x256xf32>
    %cst_58 = arith.constant dense<0.000000e+00> : vector<8x256xf32>
    %108 = tpu.matmul %106, %107, %cst_58 {dimension_numbers = #tpu.dot_dimension_numbers<[1], [0], [0], [1], [0, 0, 1, 1], [], []>, precision = #tpu.contract_precision<fp32>} : vector<8x72xf32>, vector<72x256xf32>, vector<8x256xf32> -> vector<8x256xf32>
    %c1_59 = arith.constant 1 : index
    %c0_60 = arith.constant 0 : index
    %c0_61 = arith.constant 0 : index
    %109 = vector.load %arg2[%c1_59, %c0_60, %c0_61] : memref<2x8x1xf32, #tpu.memory_space<vmem>>, vector<1x8x1xf32>
    %110 = vector.shape_cast %109 : vector<1x8x1xf32> to vector<8x1xf32>
    %111 = vector.broadcast %110 : vector<8x1xf32> to vector<8x256xf32>
    %112 = arith.addf %108, %111 : vector<8x256xf32>
    %113 = arith.addf %21, %112 : vector<8x256xf32>
    %cst_62 = arith.constant 0.000000e+00 : f32
    %114 = vector.broadcast %cst_62 : f32 to vector<8x256xf32>
    %115 = arith.cmpf oge, %113, %114 : vector<8x256xf32>
    %cst_63 = arith.constant 0.00999999977 : f32
    %116 = vector.broadcast %cst_63 : f32 to vector<8x256xf32>
    %117 = arith.mulf %116, %113 : vector<8x256xf32>
    %118 = arith.select %115, %113, %117 : vector<8x256xi1>, vector<8x256xf32>
    %c0_64 = arith.constant 0 : index
    %c0_65 = arith.constant 0 : index
    %119 = vector.load %arg4[%c0_64, %c0_65] : memref<8x256xf32, #tpu.memory_space<vmem>>, vector<8x256xf32>
    tpu.vector_store %arg4[%c0_64, %c0_65], %118 {strides = array<i32>} : memref<8x256xf32, #tpu.memory_space<vmem>>, vector<8x256xf32>,
    return
  }
  func.func @transform_0(%arg0: i32) -> (i32, i32, i32) {
    %c0_i32 = arith.constant 0 : i32
    %c0_i32_0 = arith.constant 0 : i32
    %c0_i32_1 = arith.constant 0 : i32
    %c0_i32_2 = arith.constant 0 : i32
    return %c0_i32, %c0_i32_0, %c0_i32_1 : i32, i32, i32
  }
  func.func @transform_1(%arg0: i32) -> (i32, i32, i32) {
    %c0_i32 = arith.constant 0 : i32
    %c0_i32_0 = arith.constant 0 : i32
    %c0_i32_1 = arith.constant 0 : i32
    %c0_i32_2 = arith.constant 0 : i32
    return %c0_i32, %c0_i32_0, %c0_i32_1 : i32, i32, i32
  }
  func.func @transform_2(%arg0: i32) -> (i32, i32) {
    %c0_i32 = arith.constant 0 : i32
    %c0_i32_0 = arith.constant 0 : i32
    return %arg0, %c0_i32 : i32, i32
  }
  func.func @transform_3(%arg0: i32) -> (i32, i32) {
    %c0_i32 = arith.constant 0 : i32
    %c0_i32_0 = arith.constant 0 : i32
    return %arg0, %c0_i32 : i32, i32
  }
}

</mosaic_0001>

<llo_original>
// kernel: tpu_custom_call.1
$region0: #{tpu_custom_call.1}
  #allocation0 [shape = 'u32[]', space=smem, size = 0x4, offset = 0x4, fixed_abs, tag = 'smem constant byte address 0x4 - core index']
  #allocation1 [shape = 'u32[144,128]{1,0:T(1,128)}', space=vmem, size = 0x12000, scoped, tag = 'internal scratch']
  #allocation2 [shape = 'f32[72,256]{1,0:T(8,128)}', space=vmem, size = 0x12000, scoped, tag = 'scratch operand']
  %s0 = inlined_call_operand.vmem [shape: f32[2,8,72], index: 0, kind: input, shape index: {}]
  %s1 = inlined_call_operand.vmem [shape: f32[2,8,1], index: 1, kind: input, shape index: {}]
  %s2 = inlined_call_operand.hbm [shape: f32[8,256], index: 2, kind: input, shape index: {}]
  %s3 = inlined_call_operand.hbm [shape: f32[8,256], index: 3, kind: output, shape index: {}]
  %s4 = sld [smem:[#allocation0]]
  $region26: #{tpu_custom_call.1} parent=0
    _
  %s6 = ssub.s32 1, %s4
  %s7 = scalar_select 0, %s6, %s4
  $region1: #{tpu_custom_call.1} parent=0
    #allocation3 [shape = 'u8[8192]{0}', space=vmem, size = 0x2000, scoped, tag = 'input window, operand 2, single buffered']
    #allocation4 [shape = 's32[1]{0}', space=sflag, size = 0x4, scoped, tag = 'scoped memory for tpu_custom_call.1']
    #allocation5 [shape = 's32[1]{0}', space=sflag, size = 0x4, scoped, tag = 'scoped memory for tpu_custom_call.1']
    #allocation6 [shape = 'u8[8192]{0}', space=vmem, size = 0x2000, scoped, tag = 'output window, operand 0, single buffered']
    %8 = vsyncpa [#allocation4], 0
    %9 = vsyncpa [#allocation5], 0
    // Predicated region
    $region2: #{tpu_custom_call.1} parent=1 // pred_check
      _
    $region3: #{tpu_custom_call.1} parent=1 // pred_check_branch
      %11 = sbr.rel (0) target = $region5
    $region4: #{tpu_custom_call.1} parent=1 // pred_region
      _
    $region5: #{tpu_custom_call.1} parent=1 // pred_fallthru
      _
    // Predicated region
    $region6: #{tpu_custom_call.1} parent=1 // pred_check
      _
    $region7: #{tpu_custom_call.1} parent=1 // pred_check_branch
      %13 = sbr.rel (0) target = $region9
    $region8: #{tpu_custom_call.1} parent=1 // pred_region
      _
    $region9: #{tpu_custom_call.1} parent=1 // pred_fallthru
      _
    // Predicated region
    $region10: #{tpu_custom_call.1} parent=1 // pred_check
      _
    $region11: #{tpu_custom_call.1} parent=1 // pred_check_branch
      %15 = sbr.rel (0) target = $region13
    $region12: #{tpu_custom_call.1} parent=1 // pred_region
      %s17 = ssub.s32 256, 256
      %18 = vsyncadd [#allocation4], %s17
      %s20 = sshll.u32 [#allocation3], 4
      %s21 = int_to_ptr.vmem [resolvable:$true] %s20
      %23 = dma.hbm_to_vmem [thread:$0]  %s2, 256, %s21, [#allocation4]
    $region13: #{tpu_custom_call.1} parent=1 // pred_fallthru
      _
    // Predicated region
    $region14: #{tpu_custom_call.1} parent=1 // pred_check
      _
    $region15: #{tpu_custom_call.1} parent=1 // pred_check_branch
      %25 = sbr.rel (0) target = $region17
    $region16: #{tpu_custom_call.1} parent=1 // pred_region
      %26 = dma.done [#allocation4], 256
    $region17: #{tpu_custom_call.1} parent=1 // pred_fallthru
      _
    %v27 = vlaneseq
    %v28 = vand.u32 %v27, 127
    %v29 = vadd.s32 %v28, 128
    %vm30 = vcmp.lt.s32.totalorder %v28, 0
    %v31 = vsub.s32 0, %v28
    %v32 = vsel %vm30, %v31, %v28
    %v33 = vshrl.u32 %v32, 4
    %v34 = vand.u32 %v32, 15
    %v35 = vsub.s32 0, %v34
    %v36 = vsel %vm30, %v35, %v34
    %vm37 = vcmp.lt.s32.totalorder %v29, 0
    %v38 = vsub.s32 0, %v29
    %v39 = vsel %vm37, %v38, %v29
    %v40 = vshrl.u32 %v39, 4
    %v41 = vand.u32 %v39, 15
    %v42 = vsub.s32 0, %v41
    %v43 = vsel %vm37, %v42, %v41
    %vm44 = vcmp.ne.s32.totalorder %v36, 0
    %vm45 = vcmp.ne.s32.totalorder %v43, 0
    %vm46 = vcmp.lt.s32.totalorder %v36, 0
    %vm47 = vcmp.lt.s32.totalorder %v43, 0
    %vm48 = vmand %vm46, %vm44
    %vm49 = vmand %vm47, %vm45
    %v50 = vadd.s32 %v36, 16
    %v51 = vadd.s32 %v43, 16
    %v52 = vsel %vm48, %v50, %v36
    %v53 = vsel %vm49, %v51, %v43
    %vm54 = vcmp.eq.s32.totalorder %v52, 0
    %vm55 = vcmp.eq.s32.totalorder %v53, 0
    %vm56 = vcmp.eq.s32.totalorder %v52, 15
    %vm57 = vcmp.eq.s32.totalorder %v53, 15
    %v58 = vld [vmem:[#allocation3] sm:$0xff]
    %v59 = vld [vmem:[#allocation3 + $0x8] sm:$0xff]
    %60 = vrot.lane.b32.xlu0 %v58, 16
    %v61 = vpop.permute.xlu0 %60
    %62 = vrot.lane.b32.xlu0 %v59, 16
    %v63 = vpop.permute.xlu0 %62
    %vm64 = vcmp.lt.s32.totalorder %v28, 16
    %v65 = vsel %vm64, %v61, %v63
    %v66 = vsel %vm64, %v63, %v61
    %67 = vrot.lane.b32.xlu0 %v58, 17
    %v68 = vpop.permute.xlu0 %67
    %69 = vrot.lane.b32.xlu0 %v59, 17
    %v70 = vpop.permute.xlu0 %69
    %vm71 = vcmp.lt.s32.totalorder %v28, 17
    %v72 = vsel %vm71, %v68, %v70
    %v73 = vsel %vm71, %v70, %v68
    %74 = vrot.lane.b32.xlu0 %v58, 15
    %v75 = vpop.permute.xlu0 %74
    %76 = vrot.lane.b32.xlu0 %v59, 15
    %v77 = vpop.permute.xlu0 %76
    %vm78 = vcmp.lt.s32.totalorder %v28, 15
    %v79 = vsel %vm78, %v75, %v77
    %v80 = vsel %vm78, %v77, %v75
    %v81 = vsel %vm54, 1, 0
    %v82 = vsel %vm55, 1, 0
    %vm83 = vcmp.eq.s32.totalorder %v81, 1
    %vm84 = vcmp.eq.s32.totalorder %v82, 1
    %v85 = vsel %vm83, %v80, %v73
    %v86 = vsel %vm84, %v79, %v72
    %87 = vst [vmem:[#allocation2] sm:$0xff] %v85
    %88 = vst [vmem:[#allocation2 + $0x8] sm:$0xff] %v86
    %89 = vst [vmem:[#allocation2 + $0x10] sm:$0xff] %v66
    %90 = vst [vmem:[#allocation2 + $0x18] sm:$0xff] %v65
    %v91 = vsel %vm56, 1, 0
    %v92 = vsel %vm57, 1, 0
    %vm93 = vcmp.eq.s32.totalorder %v91, 1
    %vm94 = vcmp.eq.s32.totalorder %v92, 1
    %v95 = vsel %vm93, %v73, %v80
    %v96 = vsel %vm94, %v72, %v79
    %97 = vst [vmem:[#allocation2 + $0x20] sm:$0xff] %v95
    %98 = vst [vmem:[#allocation2 + $0x28] sm:$0xff] %v96
    %99 = vrot.lane.b32.xlu0 %v58, 1
    %v100 = vpop.permute.xlu0 %99
    %101 = vrot.lane.b32.xlu0 %v59, 1
    %v102 = vpop.permute.xlu0 %101
    %vm103 = vcmp.lt.s32.totalorder %v28, 1
    %v104 = vsel %vm103, %v100, %v102
    %v105 = vsel %vm103, %v102, %v100
    %106 = vrot.lane.b32.xlu0 %v58, 127
    %v107 = vpop.permute.xlu0 %106
    %108 = vrot.lane.b32.xlu0 %v59, 127
    %v109 = vpop.permute.xlu0 %108
    %vm110 = vcmp.lt.s32.totalorder %v28, 127
    %v111 = vsel %vm110, %v107, %v109
    %v112 = vsel %vm110, %v109, %v107
    %v113 = vsel %vm83, %v111, %v105
    %v114 = vsel %vm84, %v112, %v104
    %115 = vst [vmem:[#allocation2 + $0x30] sm:$0xff] %v113
    %116 = vst [vmem:[#allocation2 + $0x38] sm:$0xff] %v114
    %117 = vst [vmem:[#allocation2 + $0x40] sm:$0xff] %v58
    %118 = vst [vmem:[#allocation2 + $0x48] sm:$0xff] %v59
    %v119 = vsel %vm93, %v105, %v111
    %v120 = vsel %vm94, %v104, %v112
    %121 = vst [vmem:[#allocation2 + $0x50] sm:$0xff] %v119
    %122 = vst [vmem:[#allocation2 + $0x58] sm:$0xff] %v120
    %123 = vrot.lane.b32.xlu0 %v58, 112
    %v124 = vpop.permute.xlu0 %123
    %125 = vrot.lane.b32.xlu0 %v59, 112
    %v126 = vpop.permute.xlu0 %125
    %vm127 = vcmp.lt.s32.totalorder %v28, 112
    %v128 = vsel %vm127, %v124, %v126
    %v129 = vsel %vm127, %v126, %v124
    %130 = vrot.lane.b32.xlu0 %v58, 113
    %v131 = vpop.permute.xlu0 %130
    %132 = vrot.lane.b32.xlu0 %v59, 113
    %v133 = vpop.permute.xlu0 %132
    %vm134 = vcmp.lt.s32.totalorder %v28, 113
    %v135 = vsel %vm134, %v131, %v133
    %v136 = vsel %vm134, %v133, %v131
    %137 = vrot.lane.b32.xlu0 %v58, 111
    %v138 = vpop.permute.xlu0 %137
    %139 = vrot.lane.b32.xlu0 %v59, 111
    %v140 = vpop.permute.xlu0 %139
    %vm141 = vcmp.lt.s32.totalorder %v28, 111
    %v142 = vsel %vm141, %v138, %v140
    %v143 = vsel %vm141, %v140, %v138
    %v144 = vsel %vm83, %v142, %v135
    %v145 = vsel %vm84, %v143, %v136
    %146 = vst [vmem:[#allocation2 + $0x60] sm:$0xff] %v144
    %147 = vst [vmem:[#allocation2 + $0x68] sm:$0xff] %v145
    %148 = vst [vmem:[#allocation2 + $0x70] sm:$0xff] %v128
    %149 = vst [vmem:[#allocation2 + $0x78] sm:$0xff] %v129
    %v150 = vsel %vm93, %v135, %v142
    %v151 = vsel %vm94, %v136, %v143
    %152 = vst [vmem:[#allocation2 + $0x80] sm:$0xff] %v150
    %153 = vst [vmem:[#allocation2 + $0x88] sm:$0xff] %v151
    %v154 = vld [vmem:[%s0] sm:$0xff]
    %v155 = vld [vmem:[#allocation2] sm:$0xff]
    %v156 = vld [vmem:[#allocation2 + $0x8] sm:$0xff]
    %v157 = vld [vmem:[#allocation2 + $0x10] sm:$0xff]
    %v158 = vld [vmem:[#allocation2 + $0x18] sm:$0xff]
    %v159 = vld [vmem:[#allocation2 + $0x20] sm:$0xff]
    %v160 = vld [vmem:[#allocation2 + $0x28] sm:$0xff]
    %v161 = vld [vmem:[#allocation2 + $0x30] sm:$0xff]
    %v162 = vld [vmem:[#allocation2 + $0x38] sm:$0xff]
    %v163 = vld [vmem:[#allocation2 + $0x40] sm:$0xff]
    %v164 = vld [vmem:[#allocation2 + $0x48] sm:$0xff]
    %v165 = vld [vmem:[#allocation2 + $0x50] sm:$0xff]
    %v166 = vld [vmem:[#allocation2 + $0x58] sm:$0xff]
    %v167 = vld [vmem:[#allocation2 + $0x60] sm:$0xff]
    %v168 = vld [vmem:[#allocation2 + $0x68] sm:$0xff]
    %v169 = vld [vmem:[#allocation2 + $0x70] sm:$0xff]
    %v170 = vld [vmem:[#allocation2 + $0x78] sm:$0xff]
    %v171 = vld [vmem:[#allocation2 + $0x80] sm:$0xff]
    %v172 = vld [vmem:[#allocation2 + $0x88] sm:$0xff]
    %v173 = vld [vmem:[%s1] sm:$0xff]
    %175 = vset.pattern.permute.xlu0 0
    %176 = vperm.xlu0 %175, %v173
    %v177 = vpop.permute.xlu0 %176
    %vm179 = vcmask 588800
    %v181 = vsel %vm179, %v154, 0
    %v183 = vand.u32 %v156, 4294901760
    %184 = vmatprep.subr.mxu0 %v183
    %v185 = vand.u32 %v155, 4294901760
    %186 = vmatpush1.msra.mxu0 %v185
    %v187 = vand.u32 %v158, 4294901760
    %188 = vmatprep.subr.mxu0 %v187
    %v189 = vand.u32 %v157, 4294901760
    %190 = vmatpush1.msra.mxu0 %v189
    %v191 = vand.u32 %v160, 4294901760
    %192 = vmatprep.subr.mxu0 %v191
    %v193 = vand.u32 %v159, 4294901760
    %194 = vmatpush1.msra.mxu0 %v193
    %v195 = vand.u32 %v162, 4294901760
    %196 = vmatprep.subr.mxu0 %v195
    %v197 = vand.u32 %v161, 4294901760
    %198 = vmatpush1.msra.mxu0 %v197
    %v199 = vand.u32 %v164, 4294901760
    %200 = vmatprep.subr.mxu0 %v199
    %v201 = vand.u32 %v163, 4294901760
    %202 = vmatpush1.msra.mxu0 %v201
    %v203 = vand.u32 %v166, 4294901760
    %204 = vmatprep.subr.mxu0 %v203
    %v205 = vand.u32 %v165, 4294901760
    %206 = vmatpush1.msra.mxu0 %v205
    %v207 = vand.u32 %v168, 4294901760
    %208 = vmatprep.subr.mxu0 %v207
    %v209 = vand.u32 %v167, 4294901760
    %210 = vmatpush1.msra.mxu0 %v209
    %v211 = vand.u32 %v170, 4294901760
    %212 = vmatprep.subr.mxu0 %v211
    %v213 = vand.u32 %v169, 4294901760
    %214 = vmatpush1.msra.mxu0 %v213
    %v215 = vand.u32 %v172, 4294901760
    %216 = vmatprep.subr.mxu0 %v215
    %v217 = vand.u32 %v171, 4294901760
    %218 = vmatpush1.msra.mxu0 %v217
    %219 = vmatprep.subr.mxu0 0.0
    %220 = vmatpush1.msra.mxu0 0.0
    %221 = vmatprep.subr.mxu0 0.0
    %222 = vmatpush1.msra.mxu0 0.0
    %223 = vmatprep.subr.mxu0 0.0
    %224 = vmatpush1.msra.mxu0 0.0
    %225 = vmatprep.subr.mxu0 0.0
    %226 = vmatpush1.msra.mxu0 0.0
    %227 = vmatprep.subr.mxu0 0.0
    %228 = vmatpush1.msra.mxu0 0.0
    %229 = vmatprep.subr.mxu0 0.0
    %230 = vmatpush1.msra.mxu0 0.0
    %231 = vmatprep.subr.mxu0 0.0
    %232 = vmatpush1.msra.mxu0 0.0
    %233 = vmatprep.subr.mxu0 0.0
    %234 = vmatpush1.msra.mxu0 0.0
    %235 = vmatprep.subr.mxu0 0.0
    %236 = vmatpush1.msra.mxu0 0.0
    %237 = vmatprep.subr.mxu0 0.0
    %238 = vmatpush1.msra.mxu0 0.0
    %239 = vmatprep.subr.mxu0 0.0
    %240 = vmatpush1.msra.mxu0 0.0
    %241 = vmatprep.subr.mxu0 0.0
    %242 = vmatpush1.msra.mxu0 0.0
    %243 = vmatprep.subr.mxu0 0.0
    %244 = vmatpush1.msra.mxu0 0.0
    %245 = vmatprep.subr.mxu0 0.0
    %246 = vmatpush1.msra.mxu0 0.0
    %247 = vmatprep.subr.mxu0 0.0
    %248 = vmatpush1.msra.mxu0 0.0
    %249 = vmatprep.subr.mxu0 0.0
    %250 = vmatpush1.msra.mxu0 0.0
    %251 = vmatprep.subr.mxu0 0.0
    %252 = vmatpush1.msra.mxu0 0.0
    %253 = vmatprep.subr.mxu0 0.0
    %254 = vmatpush1.msra.mxu0 0.0
    %255 = vmatprep.subr.mxu0 0.0
    %256 = vmatpush1.msra.mxu0 0.0
    %257 = vmatprep.subr.mxu0 0.0
    %258 = vmatpush1.msra.mxu0 0.0
    %259 = vmatprep.subr.mxu0 0.0
    %260 = vmatpush1.msra.mxu0 0.0
    %261 = vmatprep.subr.mxu0 0.0
    %262 = vmatpush1.msra.mxu0 0.0
    %263 = vmatprep.subr.mxu0 0.0
    %264 = vmatpush1.msra.mxu0 0.0
    %265 = vmatprep.mubr.f32.mxu0 0.0
    %v266 = vand.u32 %v181, 4294901760
    %v267 = vsub.f32 %v181, %v266
    %v268 = vand.u32 %v267, 4294901760
    %v269 = vsub.f32 %v267, %v268
    %v270 = vand.u32 %v269, 4294901760
    %271 = vmatmul.mubr.f32.gmra.mrb[0].mxu0 %v270
    %v272 = vpop.f32.mrb[0].mxu0
    %v273 = vadd.f32 %v177, %v272
    %v274 = vpop.f32.mrb[0].mxu0
    %v275 = vadd.f32 %v177, %v274
    %276 = vdwg.mxu0
    %v277 = vand.u32 %v156, 4294901760
    %v278 = vsub.f32 %v156, %v277
    %v279 = vand.u32 %v278, 4294901760
    %v280 = vsub.f32 %v278, %v279
    %v281 = vand.u32 %v280, 4294901760
    %282 = vmatprep.subr.mxu0 %v281
    %v283 = vand.u32 %v155, 4294901760
    %v284 = vsub.f32 %v155, %v283
    %v285 = vand.u32 %v284, 4294901760
    %v286 = vsub.f32 %v284, %v285
    %v287 = vand.u32 %v286, 4294901760
    %288 = vmatpush1.msra.mxu0 %v287
    %v289 = vand.u32 %v158, 4294901760
    %v290 = vsub.f32 %v158, %v289
    %v291 = vand.u32 %v290, 4294901760
    %v292 = vsub.f32 %v290, %v291
    %v293 = vand.u32 %v292, 4294901760
    %294 = vmatprep.subr.mxu0 %v293
    %v295 = vand.u32 %v157, 4294901760
    %v296 = vsub.f32 %v157, %v295
    %v297 = vand.u32 %v296, 4294901760
    %v298 = vsub.f32 %v296, %v297
    %v299 = vand.u32 %v298, 4294901760
    %300 = vmatpush1.msra.mxu0 %v299
    %v301 = vand.u32 %v160, 4294901760
    %v302 = vsub.f32 %v160, %v301
    %v303 = vand.u32 %v302, 4294901760
    %v304 = vsub.f32 %v302, %v303
    %v305 = vand.u32 %v304, 4294901760
    %306 = vmatprep.subr.mxu0 %v305
    %v307 = vand.u32 %v159, 4294901760
    %v308 = vsub.f32 %v159, %v307
    %v309 = vand.u32 %v308, 4294901760
    %v310 = vsub.f32 %v308, %v309
    %v311 = vand.u32 %v310, 4294901760
    %312 = vmatpush1.msra.mxu0 %v311
    %v313 = vand.u32 %v162, 4294901760
    %v314 = vsub.f32 %v162, %v313
    %v315 = vand.u32 %v314, 4294901760
    %v316 = vsub.f32 %v314, %v315
    %v317 = vand.u32 %v316, 4294901760
    %318 = vmatprep.subr.mxu0 %v317
    %v319 = vand.u32 %v161, 4294901760
    %v320 = vsub.f32 %v161, %v319
    %v321 = vand.u32 %v320, 4294901760
    %v322 = vsub.f32 %v320, %v321
    %v323 = vand.u32 %v322, 4294901760
    %324 = vmatpush1.msra.mxu0 %v323
    %v325 = vand.u32 %v164, 4294901760
    %v326 = vsub.f32 %v164, %v325
    %v327 = vand.u32 %v326, 4294901760
    %v328 = vsub.f32 %v326, %v327
    %v329 = vand.u32 %v328, 4294901760
    %330 = vmatprep.subr.mxu0 %v329
    %v331 = vand.u32 %v163, 4294901760
    %v332 = vsub.f32 %v163, %v331
    %v333 = vand.u32 %v332, 4294901760
    %v334 = vsub.f32 %v332, %v333
    %v335 = vand.u32 %v334, 4294901760
    %336 = vmatpush1.msra.mxu0 %v335
    %v337 = vand.u32 %v166, 4294901760
    %v338 = vsub.f32 %v166, %v337
    %v339 = vand.u32 %v338, 4294901760
    %v340 = vsub.f32 %v338, %v339
    %v341 = vand.u32 %v340, 4294901760
    %342 = vmatprep.subr.mxu0 %v341
    %v343 = vand.u32 %v165, 4294901760
    %v344 = vsub.f32 %v165, %v343
    %v345 = vand.u32 %v344, 4294901760
    %v346 = vsub.f32 %v344, %v345
    %v347 = vand.u32 %v346, 4294901760
    %348 = vmatpush1.msra.mxu0 %v347
    %v349 = vand.u32 %v168, 4294901760
    %v350 = vsub.f32 %v168, %v349
    %v351 = vand.u32 %v350, 4294901760
    %v352 = vsub.f32 %v350, %v351
    %v353 = vand.u32 %v352, 4294901760
    %354 = vmatprep.subr.mxu0 %v353
    %v355 = vand.u32 %v167, 4294901760
    %v356 = vsub.f32 %v167, %v355
    %v357 = vand.u32 %v356, 4294901760
    %v358 = vsub.f32 %v356, %v357
    %v359 = vand.u32 %v358, 4294901760
    %360 = vmatpush1.msra.mxu0 %v359
    %v361 = vand.u32 %v170, 4294901760
    %v362 = vsub.f32 %v170, %v361
    %v363 = vand.u32 %v362, 4294901760
    %v364 = vsub.f32 %v362, %v363
    %v365 = vand.u32 %v364, 4294901760
    %366 = vmatprep.subr.mxu0 %v365
    %v367 = vand.u32 %v169, 4294901760
    %v368 = vsub.f32 %v169, %v367
    %v369 = vand.u32 %v368, 4294901760
    %v370 = vsub.f32 %v368, %v369
    %v371 = vand.u32 %v370, 4294901760
    %372 = vmatpush1.msra.mxu0 %v371
    %v373 = vand.u32 %v172, 4294901760
    %v374 = vsub.f32 %v172, %v373
    %v375 = vand.u32 %v374, 4294901760
    %v376 = vsub.f32 %v374, %v375
    %v377 = vand.u32 %v376, 4294901760
    %378 = vmatprep.subr.mxu0 %v377
    %v379 = vand.u32 %v171, 4294901760
    %v380 = vsub.f32 %v171, %v379
    %v381 = vand.u32 %v380, 4294901760
    %v382 = vsub.f32 %v380, %v381
    %v383 = vand.u32 %v382, 4294901760
    %384 = vmatpush1.msra.mxu0 %v383
    %385 = vmatprep.subr.mxu0 0.0
    %386 = vmatpush1.msra.mxu0 0.0
    %387 = vmatprep.subr.mxu0 0.0
    %388 = vmatpush1.msra.mxu0 0.0
    %389 = vmatprep.subr.mxu0 0.0
    %390 = vmatpush1.msra.mxu0 0.0
    %391 = vmatprep.subr.mxu0 0.0
    %392 = vmatpush1.msra.mxu0 0.0
    %393 = vmatprep.subr.mxu0 0.0
    %394 = vmatpush1.msra.mxu0 0.0
    %395 = vmatprep.subr.mxu0 0.0
    %396 = vmatpush1.msra.mxu0 0.0
    %397 = vmatprep.subr.mxu0 0.0
    %398 = vmatpush1.msra.mxu0 0.0
    %399 = vmatprep.subr.mxu0 0.0
    %400 = vmatpush1.msra.mxu0 0.0
    %401 = vmatprep.subr.mxu0 0.0
    %402 = vmatpush1.msra.mxu0 0.0
    %403 = vmatprep.subr.mxu0 0.0
    %404 = vmatpush1.msra.mxu0 0.0
    %405 = vmatprep.subr.mxu0 0.0
    %406 = vmatpush1.msra.mxu0 0.0
    %407 = vmatprep.subr.mxu0 0.0
    %408 = vmatpush1.msra.mxu0 0.0
    %409 = vmatprep.subr.mxu0 0.0
    %410 = vmatpush1.msra.mxu0 0.0
    %411 = vmatprep.subr.mxu0 0.0
    %412 = vmatpush1.msra.mxu0 0.0
    %413 = vmatprep.subr.mxu0 0.0
    %414 = vmatpush1.msra.mxu0 0.0
    %415 = vmatprep.subr.mxu0 0.0
    %416 = vmatpush1.msra.mxu0 0.0
    %417 = vmatprep.subr.mxu0 0.0
    %418 = vmatpush1.msra.mxu0 0.0
    %419 = vmatprep.subr.mxu0 0.0
    %420 = vmatpush1.msra.mxu0 0.0
    %421 = vmatprep.subr.mxu0 0.0
    %422 = vmatpush1.msra.mxu0 0.0
    %423 = vmatprep.subr.mxu0 0.0
    %424 = vmatpush1.msra.mxu0 0.0
    %425 = vmatprep.subr.mxu0 0.0
    %426 = vmatpush1.msra.mxu0 0.0
    %427 = vmatprep.subr.mxu0 0.0
    %428 = vmatpush1.msra.mxu0 0.0
    %429 = vmatprep.subr.mxu0 0.0
    %430 = vmatpush1.msra.mxu0 0.0
    %431 = vmatprep.mubr.f32.mxu0 0.0
    %v432 = vand.u32 %v181, 4294901760
    %433 = vmatmul.mubr.f32.gmra.mrb[0].mxu0 %v432
    %v434 = vpop.f32.mrb[0].mxu0
    %v435 = vadd.f32 %v273, %v434
    %v436 = vpop.f32.mrb[0].mxu0
    %v437 = vadd.f32 %v275, %v436
    %438 = vdwg.mxu0
    %v439 = vand.u32 %v156, 4294901760
    %v440 = vsub.f32 %v156, %v439
    %441 = vmatprep.subr.mxu0 %v440
    %v442 = vand.u32 %v155, 4294901760
    %v443 = vsub.f32 %v155, %v442
    %444 = vmatpush1.msra.mxu0 %v443
    %v445 = vand.u32 %v158, 4294901760
    %v446 = vsub.f32 %v158, %v445
    %447 = vmatprep.subr.mxu0 %v446
    %v448 = vand.u32 %v157, 4294901760
    %v449 = vsub.f32 %v157, %v448
    %450 = vmatpush1.msra.mxu0 %v449
    %v451 = vand.u32 %v160, 4294901760
    %v452 = vsub.f32 %v160, %v451
    %453 = vmatprep.subr.mxu0 %v452
    %v454 = vand.u32 %v159, 4294901760
    %v455 = vsub.f32 %v159, %v454
    %456 = vmatpush1.msra.mxu0 %v455
    %v457 = vand.u32 %v162, 4294901760
    %v458 = vsub.f32 %v162, %v457
    %459 = vmatprep.subr.mxu0 %v458
    %v460 = vand.u32 %v161, 4294901760
    %v461 = vsub.f32 %v161, %v460
    %462 = vmatpush1.msra.mxu0 %v461
    %v463 = vand.u32 %v164, 4294901760
    %v464 = vsub.f32 %v164, %v463
    %465 = vmatprep.subr.mxu0 %v464
    %v466 = vand.u32 %v163, 4294901760
    %v467 = vsub.f32 %v163, %v466
    %468 = vmatpush1.msra.mxu0 %v467
    %v469 = vand.u32 %v166, 4294901760
    %v470 = vsub.f32 %v166, %v469
    %471 = vmatprep.subr.mxu0 %v470
    %v472 = vand.u32 %v165, 4294901760
    %v473 = vsub.f32 %v165, %v472
    %474 = vmatpush1.msra.mxu0 %v473
    %v475 = vand.u32 %v168, 4294901760
    %v476 = vsub.f32 %v168, %v475
    %477 = vmatprep.subr.mxu0 %v476
    %v478 = vand.u32 %v167, 4294901760
    %v479 = vsub.f32 %v167, %v478
    %480 = vmatpush1.msra.mxu0 %v479
    %v481 = vand.u32 %v170, 4294901760
    %v482 = vsub.f32 %v170, %v481
    %483 = vmatprep.subr.mxu0 %v482
    %v484 = vand.u32 %v169, 4294901760
    %v485 = vsub.f32 %v169, %v484
    %486 = vmatpush1.msra.mxu0 %v485
    %v487 = vand.u32 %v172, 4294901760
    %v488 = vsub.f32 %v172, %v487
    %489 = vmatprep.subr.mxu0 %v488
    %v490 = vand.u32 %v171, 4294901760
    %v491 = vsub.f32 %v171, %v490
    %492 = vmatpush1.msra.mxu0 %v491
    %493 = vmatprep.subr.mxu0 0.0
    %494 = vmatpush1.msra.mxu0 0.0
    %495 = vmatprep.subr.mxu0 0.0
    %496 = vmatpush1.msra.mxu0 0.0
    %497 = vmatprep.subr.mxu0 0.0
    %498 = vmatpush1.msra.mxu0 0.0
    %499 = vmatprep.subr.mxu0 0.0
    %500 = vmatpush1.msra.mxu0 0.0
    %501 = vmatprep.subr.mxu0 0.0
    %502 = vmatpush1.msra.mxu0 0.0
    %503 = vmatprep.subr.mxu0 0.0
    %504 = vmatpush1.msra.mxu0 0.0
    %505 = vmatprep.subr.mxu0 0.0
    %506 = vmatpush1.msra.mxu0 0.0
    %507 = vmatprep.subr.mxu0 0.0
    %508 = vmatpush1.msra.mxu0 0.0
    %509 = vmatprep.subr.mxu0 0.0
    %510 = vmatpush1.msra.mxu0 0.0
    %511 = vmatprep.subr.mxu0 0.0
    %512 = vmatpush1.msra.mxu0 0.0
    %513 = vmatprep.subr.mxu0 0.0
    %514 = vmatpush1.msra.mxu0 0.0
    %515 = vmatprep.subr.mxu0 0.0
    %516 = vmatpush1.msra.mxu0 0.0
    %517 = vmatprep.subr.mxu0 0.0
    %518 = vmatpush1.msra.mxu0 0.0
    %519 = vmatprep.subr.mxu0 0.0
    %520 = vmatpush1.msra.mxu0 0.0
    %521 = vmatprep.subr.mxu0 0.0
    %522 = vmatpush1.msra.mxu0 0.0
    %523 = vmatprep.subr.mxu0 0.0
    %524 = vmatpush1.msra.mxu0 0.0
    %525 = vmatprep.subr.mxu0 0.0
    %526 = vmatpush1.msra.mxu0 0.0
    %527 = vmatprep.subr.mxu0 0.0
    %528 = vmatpush1.msra.mxu0 0.0
    %529 = vmatprep.subr.mxu0 0.0
    %530 = vmatpush1.msra.mxu0 0.0
    %531 = vmatprep.subr.mxu0 0.0
    %532 = vmatpush1.msra.mxu0 0.0
    %533 = vmatprep.subr.mxu0 0.0
    %534 = vmatpush1.msra.mxu0 0.0
    %535 = vmatprep.subr.mxu0 0.0
    %536 = vmatpush1.msra.mxu0 0.0
    %537 = vmatprep.subr.mxu0 0.0
    %538 = vmatpush1.msra.mxu0 0.0
    %539 = vmatprep.mubr.f32.mxu0 0.0
    %v540 = vand.u32 %v181, 4294901760
    %v541 = vsub.f32 %v181, %v540
    %542 = vmatmul.mubr.f32.gmra.mrb[0].mxu0 %v541
    %v543 = vpop.f32.mrb[0].mxu0
    %v544 = vadd.f32 %v435, %v543
    %v545 = vpop.f32.mrb[0].mxu0
    %v546 = vadd.f32 %v437, %v545
    %547 = vdwg.mxu0
    %v548 = vand.u32 %v156, 4294901760
    %549 = vmatprep.subr.mxu0 %v548
    %v550 = vand.u32 %v155, 4294901760
    %551 = vmatpush1.msra.mxu0 %v550
    %v552 = vand.u32 %v158, 4294901760
    %553 = vmatprep.subr.mxu0 %v552
    %v554 = vand.u32 %v157, 4294901760
    %555 = vmatpush1.msra.mxu0 %v554
    %v556 = vand.u32 %v160, 4294901760
    %557 = vmatprep.subr.mxu0 %v556
    %v558 = vand.u32 %v159, 4294901760
    %559 = vmatpush1.msra.mxu0 %v558
    %v560 = vand.u32 %v162, 4294901760
    %561 = vmatprep.subr.mxu0 %v560
    %v562 = vand.u32 %v161, 4294901760
    %563 = vmatpush1.msra.mxu0 %v562
    %v564 = vand.u32 %v164, 4294901760
    %565 = vmatprep.subr.mxu0 %v564
    %v566 = vand.u32 %v163, 4294901760
    %567 = vmatpush1.msra.mxu0 %v566
    %v568 = vand.u32 %v166, 4294901760
    %569 = vmatprep.subr.mxu0 %v568
    %v570 = vand.u32 %v165, 4294901760
    %571 = vmatpush1.msra.mxu0 %v570
    %v572 = vand.u32 %v168, 4294901760
    %573 = vmatprep.subr.mxu0 %v572
    %v574 = vand.u32 %v167, 4294901760
    %575 = vmatpush1.msra.mxu0 %v574
    %v576 = vand.u32 %v170, 4294901760
    %577 = vmatprep.subr.mxu0 %v576
    %v578 = vand.u32 %v169, 4294901760
    %579 = vmatpush1.msra.mxu0 %v578
    %v580 = vand.u32 %v172, 4294901760
    %581 = vmatprep.subr.mxu0 %v580
    %v582 = vand.u32 %v171, 4294901760
    %583 = vmatpush1.msra.mxu0 %v582
    %584 = vmatprep.subr.mxu0 0.0
    %585 = vmatpush1.msra.mxu0 0.0
    %586 = vmatprep.subr.mxu0 0.0
    %587 = vmatpush1.msra.mxu0 0.0
    %588 = vmatprep.subr.mxu0 0.0
    %589 = vmatpush1.msra.mxu0 0.0
    %590 = vmatprep.subr.mxu0 0.0
    %591 = vmatpush1.msra.mxu0 0.0
    %592 = vmatprep.subr.mxu0 0.0
    %593 = vmatpush1.msra.mxu0 0.0
    %594 = vmatprep.subr.mxu0 0.0
    %595 = vmatpush1.msra.mxu0 0.0
    %596 = vmatprep.subr.mxu0 0.0
    %597 = vmatpush1.msra.mxu0 0.0
    %598 = vmatprep.subr.mxu0 0.0
    %599 = vmatpush1.msra.mxu0 0.0
    %600 = vmatprep.subr.mxu0 0.0
    %601 = vmatpush1.msra.mxu0 0.0
    %602 = vmatprep.subr.mxu0 0.0
    %603 = vmatpush1.msra.mxu0 0.0
    %604 = vmatprep.subr.mxu0 0.0
    %605 = vmatpush1.msra.mxu0 0.0
    %606 = vmatprep.subr.mxu0 0.0
    %607 = vmatpush1.msra.mxu0 0.0
    %608 = vmatprep.subr.mxu0 0.0
    %609 = vmatpush1.msra.mxu0 0.0
    %610 = vmatprep.subr.mxu0 0.0
    %611 = vmatpush1.msra.mxu0 0.0
    %612 = vmatprep.subr.mxu0 0.0
    %613 = vmatpush1.msra.mxu0 0.0
    %614 = vmatprep.subr.mxu0 0.0
    %615 = vmatpush1.msra.mxu0 0.0
    %616 = vmatprep.subr.mxu0 0.0
    %617 = vmatpush1.msra.mxu0 0.0
    %618 = vmatprep.subr.mxu0 0.0
    %619 = vmatpush1.msra.mxu0 0.0
    %620 = vmatprep.subr.mxu0 0.0
    %621 = vmatpush1.msra.mxu0 0.0
    %622 = vmatprep.subr.mxu0 0.0
    %623 = vmatpush1.msra.mxu0 0.0
    %624 = vmatprep.subr.mxu0 0.0
    %625 = vmatpush1.msra.mxu0 0.0
    %626 = vmatprep.subr.mxu0 0.0
    %627 = vmatpush1.msra.mxu0 0.0
    %628 = vmatprep.subr.mxu0 0.0
    %629 = vmatpush1.msra.mxu0 0.0
    %630 = vmatprep.mubr.f32.mxu0 0.0
    %v631 = vand.u32 %v181, 4294901760
    %v632 = vsub.f32 %v181, %v631
    %v633 = vand.u32 %v632, 4294901760
    %634 = vmatmul.mubr.f32.gmra.mrb[0].mxu0 %v633
    %v635 = vpop.f32.mrb[0].mxu0
    %v636 = vadd.f32 %v544, %v635
    %v637 = vpop.f32.mrb[0].mxu0
    %v638 = vadd.f32 %v546, %v637
    %639 = vdwg.mxu0
    %v640 = vand.u32 %v156, 4294901760
    %v641 = vsub.f32 %v156, %v640
    %v642 = vand.u32 %v641, 4294901760
    %643 = vmatprep.subr.mxu0 %v642
    %v644 = vand.u32 %v155, 4294901760
    %v645 = vsub.f32 %v155, %v644
    %v646 = vand.u32 %v645, 4294901760
    %647 = vmatpush1.msra.mxu0 %v646
    %v648 = vand.u32 %v158, 4294901760
    %v649 = vsub.f32 %v158, %v648
    %v650 = vand.u32 %v649, 4294901760
    %651 = vmatprep.subr.mxu0 %v650
    %v652 = vand.u32 %v157, 4294901760
    %v653 = vsub.f32 %v157, %v652
    %v654 = vand.u32 %v653, 4294901760
    %655 = vmatpush1.msra.mxu0 %v654
    %v656 = vand.u32 %v160, 4294901760
    %v657 = vsub.f32 %v160, %v656
    %v658 = vand.u32 %v657, 4294901760
    %659 = vmatprep.subr.mxu0 %v658
    %v660 = vand.u32 %v159, 4294901760
    %v661 = vsub.f32 %v159, %v660
    %v662 = vand.u32 %v661, 4294901760
    %663 = vmatpush1.msra.mxu0 %v662
    %v664 = vand.u32 %v162, 4294901760
    %v665 = vsub.f32 %v162, %v664
    %v666 = vand.u32 %v665, 4294901760
    %667 = vmatprep.subr.mxu0 %v666
    %v668 = vand.u32 %v161, 4294901760
    %v669 = vsub.f32 %v161, %v668
    %v670 = vand.u32 %v669, 4294901760
    %671 = vmatpush1.msra.mxu0 %v670
    %v672 = vand.u32 %v164, 4294901760
    %v673 = vsub.f32 %v164, %v672
    %v674 = vand.u32 %v673, 4294901760
    %675 = vmatprep.subr.mxu0 %v674
    %v676 = vand.u32 %v163, 4294901760
    %v677 = vsub.f32 %v163, %v676
    %v678 = vand.u32 %v677, 4294901760
    %679 = vmatpush1.msra.mxu0 %v678
    %v680 = vand.u32 %v166, 4294901760
    %v681 = vsub.f32 %v166, %v680
    %v682 = vand.u32 %v681, 4294901760
    %683 = vmatprep.subr.mxu0 %v682
    %v684 = vand.u32 %v165, 4294901760
    %v685 = vsub.f32 %v165, %v684
    %v686 = vand.u32 %v685, 4294901760
    %687 = vmatpush1.msra.mxu0 %v686
    %v688 = vand.u32 %v168, 4294901760
    %v689 = vsub.f32 %v168, %v688
    %v690 = vand.u32 %v689, 4294901760
    %691 = vmatprep.subr.mxu0 %v690
    %v692 = vand.u32 %v167, 4294901760
    %v693 = vsub.f32 %v167, %v692
    %v694 = vand.u32 %v693, 4294901760
    %695 = vmatpush1.msra.mxu0 %v694
    %v696 = vand.u32 %v170, 4294901760
    %v697 = vsub.f32 %v170, %v696
    %v698 = vand.u32 %v697, 4294901760
    %699 = vmatprep.subr.mxu0 %v698
    %v700 = vand.u32 %v169, 4294901760
    %v701 = vsub.f32 %v169, %v700
    %v702 = vand.u32 %v701, 4294901760
    %703 = vmatpush1.msra.mxu0 %v702
    %v704 = vand.u32 %v172, 4294901760
    %v705 = vsub.f32 %v172, %v704
    %v706 = vand.u32 %v705, 4294901760
    %707 = vmatprep.subr.mxu0 %v706
    %v708 = vand.u32 %v171, 4294901760
    %v709 = vsub.f32 %v171, %v708
    %v710 = vand.u32 %v709, 4294901760
    %711 = vmatpush1.msra.mxu0 %v710
    %712 = vmatprep.subr.mxu0 0.0
    %713 = vmatpush1.msra.mxu0 0.0
    %714 = vmatprep.subr.mxu0 0.0
    %715 = vmatpush1.msra.mxu0 0.0
    %716 = vmatprep.subr.mxu0 0.0
    %717 = vmatpush1.msra.mxu0 0.0
    %718 = vmatprep.subr.mxu0 0.0
    %719 = vmatpush1.msra.mxu0 0.0
    %720 = vmatprep.subr.mxu0 0.0
    %721 = vmatpush1.msra.mxu0 0.0
    %722 = vmatprep.subr.mxu0 0.0
    %723 = vmatpush1.msra.mxu0 0.0
    %724 = vmatprep.subr.mxu0 0.0
    %725 = vmatpush1.msra.mxu0 0.0
    %726 = vmatprep.subr.mxu0 0.0
    %727 = vmatpush1.msra.mxu0 0.0
    %728 = vmatprep.subr.mxu0 0.0
    %729 = vmatpush1.msra.mxu0 0.0
    %730 = vmatprep.subr.mxu0 0.0
    %731 = vmatpush1.msra.mxu0 0.0
    %732 = vmatprep.subr.mxu0 0.0
    %733 = vmatpush1.msra.mxu0 0.0
    %734 = vmatprep.subr.mxu0 0.0
    %735 = vmatpush1.msra.mxu0 0.0
    %736 = vmatprep.subr.mxu0 0.0
    %737 = vmatpush1.msra.mxu0 0.0
    %738 = vmatprep.subr.mxu0 0.0
    %739 = vmatpush1.msra.mxu0 0.0
    %740 = vmatprep.subr.mxu0 0.0
    %741 = vmatpush1.msra.mxu0 0.0
    %742 = vmatprep.subr.mxu0 0.0
    %743 = vmatpush1.msra.mxu0 0.0
    %744 = vmatprep.subr.mxu0 0.0
    %745 = vmatpush1.msra.mxu0 0.0
    %746 = vmatprep.subr.mxu0 0.0
    %747 = vmatpush1.msra.mxu0 0.0
    %748 = vmatprep.subr.mxu0 0.0
    %749 = vmatpush1.msra.mxu0 0.0
    %750 = vmatprep.subr.mxu0 0.0
    %751 = vmatpush1.msra.mxu0 0.0
    %752 = vmatprep.subr.mxu0 0.0
    %753 = vmatpush1.msra.mxu0 0.0
    %754 = vmatprep.subr.mxu0 0.0
    %755 = vmatpush1.msra.mxu0 0.0
    %756 = vmatprep.subr.mxu0 0.0
    %757 = vmatpush1.msra.mxu0 0.0
    %758 = vmatprep.mubr.f32.mxu0 0.0
    %v759 = vand.u32 %v181, 4294901760
    %760 = vmatmul.mubr.f32.gmra.mrb[0].mxu0 %v759
    %v761 = vpop.f32.mrb[0].mxu0
    %v762 = vadd.f32 %v636, %v761
    %v763 = vpop.f32.mrb[0].mxu0
    %v764 = vadd.f32 %v638, %v763
    %765 = vdwg.mxu0
    %v766 = vand.u32 %v156, 4294901760
    %767 = vmatprep.subr.mxu0 %v766
    %v768 = vand.u32 %v155, 4294901760
    %769 = vmatpush1.msra.mxu0 %v768
    %v770 = vand.u32 %v158, 4294901760
    %771 = vmatprep.subr.mxu0 %v770
    %v772 = vand.u32 %v157, 4294901760
    %773 = vmatpush1.msra.mxu0 %v772
    %v774 = vand.u32 %v160, 4294901760
    %775 = vmatprep.subr.mxu0 %v774
    %v776 = vand.u32 %v159, 4294901760
    %777 = vmatpush1.msra.mxu0 %v776
    %v778 = vand.u32 %v162, 4294901760
    %779 = vmatprep.subr.mxu0 %v778
    %v780 = vand.u32 %v161, 4294901760
    %781 = vmatpush1.msra.mxu0 %v780
    %v782 = vand.u32 %v164, 4294901760
    %783 = vmatprep.subr.mxu0 %v782
    %v784 = vand.u32 %v163, 4294901760
    %785 = vmatpush1.msra.mxu0 %v784
    %v786 = vand.u32 %v166, 4294901760
    %787 = vmatprep.subr.mxu0 %v786
    %v788 = vand.u32 %v165, 4294901760
    %789 = vmatpush1.msra.mxu0 %v788
    %v790 = vand.u32 %v168, 4294901760
    %791 = vmatprep.subr.mxu0 %v790
    %v792 = vand.u32 %v167, 4294901760
    %793 = vmatpush1.msra.mxu0 %v792
    %v794 = vand.u32 %v170, 4294901760
    %795 = vmatprep.subr.mxu0 %v794
    %v796 = vand.u32 %v169, 4294901760
    %797 = vmatpush1.msra.mxu0 %v796
    %v798 = vand.u32 %v172, 4294901760
    %799 = vmatprep.subr.mxu0 %v798
    %v800 = vand.u32 %v171, 4294901760
    %801 = vmatpush1.msra.mxu0 %v800
    %802 = vmatprep.subr.mxu0 0.0
    %803 = vmatpush1.msra.mxu0 0.0
    %804 = vmatprep.subr.mxu0 0.0
    %805 = vmatpush1.msra.mxu0 0.0
    %806 = vmatprep.subr.mxu0 0.0
    %807 = vmatpush1.msra.mxu0 0.0
    %808 = vmatprep.subr.mxu0 0.0
    %809 = vmatpush1.msra.mxu0 0.0
    %810 = vmatprep.subr.mxu0 0.0
    %811 = vmatpush1.msra.mxu0 0.0
    %812 = vmatprep.subr.mxu0 0.0
    %813 = vmatpush1.msra.mxu0 0.0
    %814 = vmatprep.subr.mxu0 0.0
    %815 = vmatpush1.msra.mxu0 0.0
    %816 = vmatprep.subr.mxu0 0.0
    %817 = vmatpush1.msra.mxu0 0.0
    %818 = vmatprep.subr.mxu0 0.0
    %819 = vmatpush1.msra.mxu0 0.0
    %820 = vmatprep.subr.mxu0 0.0
    %821 = vmatpush1.msra.mxu0 0.0
    %822 = vmatprep.subr.mxu0 0.0
    %823 = vmatpush1.msra.mxu0 0.0
    %824 = vmatprep.subr.mxu0 0.0
    %825 = vmatpush1.msra.mxu0 0.0
    %826 = vmatprep.subr.mxu0 0.0
    %827 = vmatpush1.msra.mxu0 0.0
    %828 = vmatprep.subr.mxu0 0.0
    %829 = vmatpush1.msra.mxu0 0.0
    %830 = vmatprep.subr.mxu0 0.0
    %831 = vmatpush1.msra.mxu0 0.0
    %832 = vmatprep.subr.mxu0 0.0
    %833 = vmatpush1.msra.mxu0 0.0
    %834 = vmatprep.subr.mxu0 0.0
    %835 = vmatpush1.msra.mxu0 0.0
    %836 = vmatprep.subr.mxu0 0.0
    %837 = vmatpush1.msra.mxu0 0.0
    %838 = vmatprep.subr.mxu0 0.0
    %839 = vmatpush1.msra.mxu0 0.0
    %840 = vmatprep.subr.mxu0 0.0
    %841 = vmatpush1.msra.mxu0 0.0
    %842 = vmatprep.subr.mxu0 0.0
    %843 = vmatpush1.msra.mxu0 0.0
    %844 = vmatprep.subr.mxu0 0.0
    %845 = vmatpush1.msra.mxu0 0.0
    %846 = vmatprep.subr.mxu0 0.0
    %847 = vmatpush1.msra.mxu0 0.0
    %848 = vmatprep.mubr.f32.mxu0 0.0
    %v849 = vand.u32 %v181, 4294901760
    %850 = vmatmul.mubr.f32.gmra.mrb[0].mxu0 %v849
    %v851 = vpop.f32.mrb[0].mxu0
    %v852 = vadd.f32 %v762, %v851
    %v853 = vpop.f32.mrb[0].mxu0
    %v854 = vadd.f32 %v764, %v853
    %855 = vdwg.mxu0
    %vm856 = vcmp.ge.f32.partialorder %v852, 0.0
    %vm857 = vcmp.ge.f32.partialorder %v854, 0.0
    %v858 = vmul.f32 %v852, 0.01
    %v859 = vmul.f32 %v854, 0.01
    %v860 = vsel %vm856, %v852, %v858
    %v861 = vsel %vm857, %v854, %v859
    %862 = vrot.lane.b32.xlu0 %v860, 16
    %v863 = vpop.permute.xlu0 %862
    %864 = vrot.lane.b32.xlu0 %v861, 16
    %v865 = vpop.permute.xlu0 %864
    %v866 = vsel %vm64, %v863, %v865
    %v867 = vsel %vm64, %v865, %v863
    %868 = vrot.lane.b32.xlu0 %v860, 17
    %v869 = vpop.permute.xlu0 %868
    %870 = vrot.lane.b32.xlu0 %v861, 17
    %v871 = vpop.permute.xlu0 %870
    %v872 = vsel %vm71, %v869, %v871
    %v873 = vsel %vm71, %v871, %v869
    %874 = vrot.lane.b32.xlu0 %v860, 15
    %v875 = vpop.permute.xlu0 %874
    %876 = vrot.lane.b32.xlu0 %v861, 15
    %v877 = vpop.permute.xlu0 %876
    %v878 = vsel %vm78, %v875, %v877
    %v879 = vsel %vm78, %v877, %v875
    %v880 = vsel %vm83, %v879, %v873
    %v881 = vsel %vm84, %v878, %v872
    %882 = vst [vmem:[#allocation2] sm:$0xff] %v880
    %883 = vst [vmem:[#allocation2 + $0x8] sm:$0xff] %v881
    %884 = vst [vmem:[#allocation2 + $0x10] sm:$0xff] %v867
    %885 = vst [vmem:[#allocation2 + $0x18] sm:$0xff] %v866
    %v886 = vsel %vm93, %v873, %v879
    %v887 = vsel %vm94, %v872, %v878
    %888 = vst [vmem:[#allocation2 + $0x20] sm:$0xff] %v886
    %889 = vst [vmem:[#allocation2 + $0x28] sm:$0xff] %v887
    %890 = vrot.lane.b32.xlu0 %v860, 1
    %v891 = vpop.permute.xlu0 %890
    %892 = vrot.lane.b32.xlu0 %v861, 1
    %v893 = vpop.permute.xlu0 %892
    %v894 = vsel %vm103, %v891, %v893
    %v895 = vsel %vm103, %v893, %v891
    %896 = vrot.lane.b32.xlu0 %v860, 127
    %v897 = vpop.permute.xlu0 %896
    %898 = vrot.lane.b32.xlu0 %v861, 127
    %v899 = vpop.permute.xlu0 %898
    %v900 = vsel %vm110, %v897, %v899
    %v901 = vsel %vm110, %v899, %v897
    %v902 = vsel %vm83, %v900, %v895
    %v903 = vsel %vm84, %v901, %v894
    %904 = vst [vmem:[#allocation2 + $0x30] sm:$0xff] %v902
    %905 = vst [vmem:[#allocation2 + $0x38] sm:$0xff] %v903
    %906 = vst [vmem:[#allocation2 + $0x40] sm:$0xff] %v860
    %907 = vst [vmem:[#allocation2 + $0x48] sm:$0xff] %v861
    %v908 = vsel %vm93, %v895, %v900
    %v909 = vsel %vm94, %v894, %v901
    %910 = vst [vmem:[#allocation2 + $0x50] sm:$0xff] %v908
    %911 = vst [vmem:[#allocation2 + $0x58] sm:$0xff] %v909
    %912 = vrot.lane.b32.xlu0 %v860, 112
    %v913 = vpop.permute.xlu0 %912
    %914 = vrot.lane.b32.xlu0 %v861, 112
    %v915 = vpop.permute.xlu0 %914
    %v916 = vsel %vm127, %v913, %v915
    %v917 = vsel %vm127, %v915, %v913
    %918 = vrot.lane.b32.xlu0 %v860, 113
    %v919 = vpop.permute.xlu0 %918
    %920 = vrot.lane.b32.xlu0 %v861, 113
    %v921 = vpop.permute.xlu0 %920
    %v922 = vsel %vm134, %v919, %v921
    %v923 = vsel %vm134, %v921, %v919
    %924 = vrot.lane.b32.xlu0 %v860, 111
    %v925 = vpop.permute.xlu0 %924
    %926 = vrot.lane.b32.xlu0 %v861, 111
    %v927 = vpop.permute.xlu0 %926
    %v928 = vsel %vm141, %v925, %v927
    %v929 = vsel %vm141, %v927, %v925
    %v930 = vsel %vm83, %v928, %v922
    %v931 = vsel %vm84, %v929, %v923
    %932 = vst [vmem:[#allocation2 + $0x60] sm:$0xff] %v930
    %933 = vst [vmem:[#allocation2 + $0x68] sm:$0xff] %v931
    %934 = vst [vmem:[#allocation2 + $0x70] sm:$0xff] %v916
    %935 = vst [vmem:[#allocation2 + $0x78] sm:$0xff] %v917
    %v936 = vsel %vm93, %v922, %v928
    %v937 = vsel %vm94, %v923, %v929
    %938 = vst [vmem:[#allocation2 + $0x80] sm:$0xff] %v936
    %939 = vst [vmem:[#allocation2 + $0x88] sm:$0xff] %v937
    %s940 = scalar_lea.vmem %s0, 8
    %v941 = vld [vmem:[%s940] sm:$0xff]
    %v942 = vld [vmem:[#allocation2] sm:$0xff]
    %v943 = vld [vmem:[#allocation2 + $0x8] sm:$0xff]
    %v944 = vld [vmem:[#allocation2 + $0x10] sm:$0xff]
    %v945 = vld [vmem:[#allocation2 + $0x18] sm:$0xff]
    %v946 = vld [vmem:[#allocation2 + $0x20] sm:$0xff]
    %v947 = vld [vmem:[#allocation2 + $0x28] sm:$0xff]
    %v948 = vld [vmem:[#allocation2 + $0x30] sm:$0xff]
    %v949 = vld [vmem:[#allocation2 + $0x38] sm:$0xff]
    %v950 = vld [vmem:[#allocation2 + $0x40] sm:$0xff]
    %v951 = vld [vmem:[#allocation2 + $0x48] sm:$0xff]
    %v952 = vld [vmem:[#allocation2 + $0x50] sm:$0xff]
    %v953 = vld [vmem:[#allocation2 + $0x58] sm:$0xff]
    %v954 = vld [vmem:[#allocation2 + $0x60] sm:$0xff]
    %v955 = vld [vmem:[#allocation2 + $0x68] sm:$0xff]
    %v956 = vld [vmem:[#allocation2 + $0x70] sm:$0xff]
    %v957 = vld [vmem:[#allocation2 + $0x78] sm:$0xff]
    %v958 = vld [vmem:[#allocation2 + $0x80] sm:$0xff]
    %v959 = vld [vmem:[#allocation2 + $0x88] sm:$0xff]
    %s960 = scalar_lea.vmem %s1, 8
    %v961 = vld [vmem:[%s960] sm:$0xff]
    %963 = vset.pattern.permute.xlu0 0
    %964 = vperm.xlu0 %963, %v961
    %v965 = vpop.permute.xlu0 %964
    %v968 = vsel %vm179, %v941, 0
    %v970 = vand.u32 %v943, 4294901760
    %971 = vmatprep.subr.mxu0 %v970
    %v972 = vand.u32 %v942, 4294901760
    %973 = vmatpush1.msra.mxu0 %v972
    %v974 = vand.u32 %v945, 4294901760
    %975 = vmatprep.subr.mxu0 %v974
    %v976 = vand.u32 %v944, 4294901760
    %977 = vmatpush1.msra.mxu0 %v976
    %v978 = vand.u32 %v947, 4294901760
    %979 = vmatprep.subr.mxu0 %v978
    %v980 = vand.u32 %v946, 4294901760
    %981 = vmatpush1.msra.mxu0 %v980
    %v982 = vand.u32 %v949, 4294901760
    %983 = vmatprep.subr.mxu0 %v982
    %v984 = vand.u32 %v948, 4294901760
    %985 = vmatpush1.msra.mxu0 %v984
    %v986 = vand.u32 %v951, 4294901760
    %987 = vmatprep.subr.mxu0 %v986
    %v988 = vand.u32 %v950, 4294901760
    %989 = vmatpush1.msra.mxu0 %v988
    %v990 = vand.u32 %v953, 4294901760
    %991 = vmatprep.subr.mxu0 %v990
    %v992 = vand.u32 %v952, 4294901760
    %993 = vmatpush1.msra.mxu0 %v992
    %v994 = vand.u32 %v955, 4294901760
    %995 = vmatprep.subr.mxu0 %v994
    %v996 = vand.u32 %v954, 4294901760
    %997 = vmatpush1.msra.mxu0 %v996
    %v998 = vand.u32 %v957, 4294901760
    %999 = vmatprep.subr.mxu0 %v998
    %v1000 = vand.u32 %v956, 4294901760
    %1001 = vmatpush1.msra.mxu0 %v1000
    %v1002 = vand.u32 %v959, 4294901760
    %1003 = vmatprep.subr.mxu0 %v1002
    %v1004 = vand.u32 %v958, 4294901760
    %1005 = vmatpush1.msra.mxu0 %v1004
    %1006 = vmatprep.subr.mxu0 0.0
    %1007 = vmatpush1.msra.mxu0 0.0
    %1008 = vmatprep.subr.mxu0 0.0
    %1009 = vmatpush1.msra.mxu0 0.0
    %1010 = vmatprep.subr.mxu0 0.0
    %1011 = vmatpush1.msra.mxu0 0.0
    %1012 = vmatprep.subr.mxu0 0.0
    %1013 = vmatpush1.msra.mxu0 0.0
    %1014 = vmatprep.subr.mxu0 0.0
    %1015 = vmatpush1.msra.mxu0 0.0
    %1016 = vmatprep.subr.mxu0 0.0
    %1017 = vmatpush1.msra.mxu0 0.0
    %1018 = vmatprep.subr.mxu0 0.0
    %1019 = vmatpush1.msra.mxu0 0.0
    %1020 = vmatprep.subr.mxu0 0.0
    %1021 = vmatpush1.msra.mxu0 0.0
    %1022 = vmatprep.subr.mxu0 0.0
    %1023 = vmatpush1.msra.mxu0 0.0
    %1024 = vmatprep.subr.mxu0 0.0
    %1025 = vmatpush1.msra.mxu0 0.0
    %1026 = vmatprep.subr.mxu0 0.0
    %1027 = vmatpush1.msra.mxu0 0.0
    %1028 = vmatprep.subr.mxu0 0.0
    %1029 = vmatpush1.msra.mxu0 0.0
    %1030 = vmatprep.subr.mxu0 0.0
    %1031 = vmatpush1.msra.mxu0 0.0
    %1032 = vmatprep.subr.mxu0 0.0
    %1033 = vmatpush1.msra.mxu0 0.0
    %1034 = vmatprep.subr.mxu0 0.0
    %1035 = vmatpush1.msra.mxu0 0.0
    %1036 = vmatprep.subr.mxu0 0.0
    %1037 = vmatpush1.msra.mxu0 0.0
    %1038 = vmatprep.subr.mxu0 0.0
    %1039 = vmatpush1.msra.mxu0 0.0
    %1040 = vmatprep.subr.mxu0 0.0
    %1041 = vmatpush1.msra.mxu0 0.0
    %1042 = vmatprep.subr.mxu0 0.0
    %1043 = vmatpush1.msra.mxu0 0.0
    %1044 = vmatprep.subr.mxu0 0.0
    %1045 = vmatpush1.msra.mxu0 0.0
    %1046 = vmatprep.subr.mxu0 0.0
    %1047 = vmatpush1.msra.mxu0 0.0
    %1048 = vmatprep.subr.mxu0 0.0
    %1049 = vmatpush1.msra.mxu0 0.0
    %1050 = vmatprep.subr.mxu0 0.0
    %1051 = vmatpush1.msra.mxu0 0.0
    %1052 = vmatprep.mubr.f32.mxu0 0.0
    %v1053 = vand.u32 %v968, 4294901760
    %v1054 = vsub.f32 %v968, %v1053
    %v1055 = vand.u32 %v1054, 4294901760
    %v1056 = vsub.f32 %v1054, %v1055
    %v1057 = vand.u32 %v1056, 4294901760
    %1058 = vmatmul.mubr.f32.gmra.mrb[0].mxu0 %v1057
    %v1059 = vpop.f32.mrb[0].mxu0
    %v1060 = vadd.f32 %v965, %v1059
    %v1061 = vpop.f32.mrb[0].mxu0
    %v1062 = vadd.f32 %v965, %v1061
    %1063 = vdwg.mxu0
    %v1064 = vand.u32 %v943, 4294901760
    %v1065 = vsub.f32 %v943, %v1064
    %v1066 = vand.u32 %v1065, 4294901760
    %v1067 = vsub.f32 %v1065, %v1066
    %v1068 = vand.u32 %v1067, 4294901760
    %1069 = vmatprep.subr.mxu0 %v1068
    %v1070 = vand.u32 %v942, 4294901760
    %v1071 = vsub.f32 %v942, %v1070
    %v1072 = vand.u32 %v1071, 4294901760
    %v1073 = vsub.f32 %v1071, %v1072
    %v1074 = vand.u32 %v1073, 4294901760
    %1075 = vmatpush1.msra.mxu0 %v1074
    %v1076 = vand.u32 %v945, 4294901760
    %v1077 = vsub.f32 %v945, %v1076
    %v1078 = vand.u32 %v1077, 4294901760
    %v1079 = vsub.f32 %v1077, %v1078
    %v1080 = vand.u32 %v1079, 4294901760
    %1081 = vmatprep.subr.mxu0 %v1080
    %v1082 = vand.u32 %v944, 4294901760
    %v1083 = vsub.f32 %v944, %v1082
    %v1084 = vand.u32 %v1083, 4294901760
    %v1085 = vsub.f32 %v1083, %v1084
    %v1086 = vand.u32 %v1085, 4294901760
    %1087 = vmatpush1.msra.mxu0 %v1086
    %v1088 = vand.u32 %v947, 4294901760
    %v1089 = vsub.f32 %v947, %v1088
    %v1090 = vand.u32 %v1089, 4294901760
    %v1091 = vsub.f32 %v1089, %v1090
    %v1092 = vand.u32 %v1091, 4294901760
    %1093 = vmatprep.subr.mxu0 %v1092
    %v1094 = vand.u32 %v946, 4294901760
    %v1095 = vsub.f32 %v946, %v1094
    %v1096 = vand.u32 %v1095, 4294901760
    %v1097 = vsub.f32 %v1095, %v1096
    %v1098 = vand.u32 %v1097, 4294901760
    %1099 = vmatpush1.msra.mxu0 %v1098
    %v1100 = vand.u32 %v949, 4294901760
    %v1101 = vsub.f32 %v949, %v1100
    %v1102 = vand.u32 %v1101, 4294901760
    %v1103 = vsub.f32 %v1101, %v1102
    %v1104 = vand.u32 %v1103, 4294901760
    %1105 = vmatprep.subr.mxu0 %v1104
    %v1106 = vand.u32 %v948, 4294901760
    %v1107 = vsub.f32 %v948, %v1106
    %v1108 = vand.u32 %v1107, 4294901760
    %v1109 = vsub.f32 %v1107, %v1108
    %v1110 = vand.u32 %v1109, 4294901760
    %1111 = vmatpush1.msra.mxu0 %v1110
    %v1112 = vand.u32 %v951, 4294901760
    %v1113 = vsub.f32 %v951, %v1112
    %v1114 = vand.u32 %v1113, 4294901760
    %v1115 = vsub.f32 %v1113, %v1114
    %v1116 = vand.u32 %v1115, 4294901760
    %1117 = vmatprep.subr.mxu0 %v1116
    %v1118 = vand.u32 %v950, 4294901760
    %v1119 = vsub.f32 %v950, %v1118
    %v1120 = vand.u32 %v1119, 4294901760
    %v1121 = vsub.f32 %v1119, %v1120
    %v1122 = vand.u32 %v1121, 4294901760
    %1123 = vmatpush1.msra.mxu0 %v1122
    %v1124 = vand.u32 %v953, 4294901760
    %v1125 = vsub.f32 %v953, %v1124
    %v1126 = vand.u32 %v1125, 4294901760
    %v1127 = vsub.f32 %v1125, %v1126
    %v1128 = vand.u32 %v1127, 4294901760
    %1129 = vmatprep.subr.mxu0 %v1128
    %v1130 = vand.u32 %v952, 4294901760
    %v1131 = vsub.f32 %v952, %v1130
    %v1132 = vand.u32 %v1131, 4294901760
    %v1133 = vsub.f32 %v1131, %v1132
    %v1134 = vand.u32 %v1133, 4294901760
    %1135 = vmatpush1.msra.mxu0 %v1134
    %v1136 = vand.u32 %v955, 4294901760
    %v1137 = vsub.f32 %v955, %v1136
    %v1138 = vand.u32 %v1137, 4294901760
    %v1139 = vsub.f32 %v1137, %v1138
    %v1140 = vand.u32 %v1139, 4294901760
    %1141 = vmatprep.subr.mxu0 %v1140
    %v1142 = vand.u32 %v954, 4294901760
    %v1143 = vsub.f32 %v954, %v1142
    %v1144 = vand.u32 %v1143, 4294901760
    %v1145 = vsub.f32 %v1143, %v1144
    %v1146 = vand.u32 %v1145, 4294901760
    %1147 = vmatpush1.msra.mxu0 %v1146
    %v1148 = vand.u32 %v957, 4294901760
    %v1149 = vsub.f32 %v957, %v1148
    %v1150 = vand.u32 %v1149, 4294901760
    %v1151 = vsub.f32 %v1149, %v1150
    %v1152 = vand.u32 %v1151, 4294901760
    %1153 = vmatprep.subr.mxu0 %v1152
    %v1154 = vand.u32 %v956, 4294901760
    %v1155 = vsub.f32 %v956, %v1154
    %v1156 = vand.u32 %v1155, 4294901760
    %v1157 = vsub.f32 %v1155, %v1156
    %v1158 = vand.u32 %v1157, 4294901760
    %1159 = vmatpush1.msra.mxu0 %v1158
    %v1160 = vand.u32 %v959, 4294901760
    %v1161 = vsub.f32 %v959, %v1160
    %v1162 = vand.u32 %v1161, 4294901760
    %v1163 = vsub.f32 %v1161, %v1162
    %v1164 = vand.u32 %v1163, 4294901760
    %1165 = vmatprep.subr.mxu0 %v1164
    %v1166 = vand.u32 %v958, 4294901760
    %v1167 = vsub.f32 %v958, %v1166
    %v1168 = vand.u32 %v1167, 4294901760
    %v1169 = vsub.f32 %v1167, %v1168
    %v1170 = vand.u32 %v1169, 4294901760
    %1171 = vmatpush1.msra.mxu0 %v1170
    %1172 = vmatprep.subr.mxu0 0.0
    %1173 = vmatpush1.msra.mxu0 0.0
    %1174 = vmatprep.subr.mxu0 0.0
    %1175 = vmatpush1.msra.mxu0 0.0
    %1176 = vmatprep.subr.mxu0 0.0
    %1177 = vmatpush1.msra.mxu0 0.0
    %1178 = vmatprep.subr.mxu0 0.0
    %1179 = vmatpush1.msra.mxu0 0.0
    %1180 = vmatprep.subr.mxu0 0.0
    %1181 = vmatpush1.msra.mxu0 0.0
    %1182 = vmatprep.subr.mxu0 0.0
    %1183 = vmatpush1.msra.mxu0 0.0
    %1184 = vmatprep.subr.mxu0 0.0
    %1185 = vmatpush1.msra.mxu0 0.0
    %1186 = vmatprep.subr.mxu0 0.0
    %1187 = vmatpush1.msra.mxu0 0.0
    %1188 = vmatprep.subr.mxu0 0.0
    %1189 = vmatpush1.msra.mxu0 0.0
    %1190 = vmatprep.subr.mxu0 0.0
    %1191 = vmatpush1.msra.mxu0 0.0
    %1192 = vmatprep.subr.mxu0 0.0
    %1193 = vmatpush1.msra.mxu0 0.0
    %1194 = vmatprep.subr.mxu0 0.0
    %1195 = vmatpush1.msra.mxu0 0.0
    %1196 = vmatprep.subr.mxu0 0.0
    %1197 = vmatpush1.msra.mxu0 0.0
    %1198 = vmatprep.subr.mxu0 0.0
    %1199 = vmatpush1.msra.mxu0 0.0
    %1200 = vmatprep.subr.mxu0 0.0
    %1201 = vmatpush1.msra.mxu0 0.0
    %1202 = vmatprep.subr.mxu0 0.0
    %1203 = vmatpush1.msra.mxu0 0.0
    %1204 = vmatprep.subr.mxu0 0.0
    %1205 = vmatpush1.msra.mxu0 0.0
    %1206 = vmatprep.subr.mxu0 0.0
    %1207 = vmatpush1.msra.mxu0 0.0
    %1208 = vmatprep.subr.mxu0 0.0
    %1209 = vmatpush1.msra.mxu0 0.0
    %1210 = vmatprep.subr.mxu0 0.0
    %1211 = vmatpush1.msra.mxu0 0.0
    %1212 = vmatprep.subr.mxu0 0.0
    %1213 = vmatpush1.msra.mxu0 0.0
    %1214 = vmatprep.subr.mxu0 0.0
    %1215 = vmatpush1.msra.mxu0 0.0
    %1216 = vmatprep.subr.mxu0 0.0
    %1217 = vmatpush1.msra.mxu0 0.0
    %1218 = vmatprep.mubr.f32.mxu0 0.0
    %v1219 = vand.u32 %v968, 4294901760
    %1220 = vmatmul.mubr.f32.gmra.mrb[0].mxu0 %v1219
    %v1221 = vpop.f32.mrb[0].mxu0
    %v1222 = vadd.f32 %v1060, %v1221
    %v1223 = vpop.f32.mrb[0].mxu0
    %v1224 = vadd.f32 %v1062, %v1223
    %1225 = vdwg.mxu0
    %v1226 = vand.u32 %v943, 4294901760
    %v1227 = vsub.f32 %v943, %v1226
    %1228 = vmatprep.subr.mxu0 %v1227
    %v1229 = vand.u32 %v942, 4294901760
    %v1230 = vsub.f32 %v942, %v1229
    %1231 = vmatpush1.msra.mxu0 %v1230
    %v1232 = vand.u32 %v945, 4294901760
    %v1233 = vsub.f32 %v945, %v1232
    %1234 = vmatprep.subr.mxu0 %v1233
    %v1235 = vand.u32 %v944, 4294901760
    %v1236 = vsub.f32 %v944, %v1235
    %1237 = vmatpush1.msra.mxu0 %v1236
    %v1238 = vand.u32 %v947, 4294901760
    %v1239 = vsub.f32 %v947, %v1238
    %1240 = vmatprep.subr.mxu0 %v1239
    %v1241 = vand.u32 %v946, 4294901760
    %v1242 = vsub.f32 %v946, %v1241
    %1243 = vmatpush1.msra.mxu0 %v1242
    %v1244 = vand.u32 %v949, 4294901760
    %v1245 = vsub.f32 %v949, %v1244
    %1246 = vmatprep.subr.mxu0 %v1245
    %v1247 = vand.u32 %v948, 4294901760
    %v1248 = vsub.f32 %v948, %v1247
    %1249 = vmatpush1.msra.mxu0 %v1248
    %v1250 = vand.u32 %v951, 4294901760
    %v1251 = vsub.f32 %v951, %v1250
    %1252 = vmatprep.subr.mxu0 %v1251
    %v1253 = vand.u32 %v950, 4294901760
    %v1254 = vsub.f32 %v950, %v1253
    %1255 = vmatpush1.msra.mxu0 %v1254
    %v1256 = vand.u32 %v953, 4294901760
    %v1257 = vsub.f32 %v953, %v1256
    %1258 = vmatprep.subr.mxu0 %v1257
    %v1259 = vand.u32 %v952, 4294901760
    %v1260 = vsub.f32 %v952, %v1259
    %1261 = vmatpush1.msra.mxu0 %v1260
    %v1262 = vand.u32 %v955, 4294901760
    %v1263 = vsub.f32 %v955, %v1262
    %1264 = vmatprep.subr.mxu0 %v1263
    %v1265 = vand.u32 %v954, 4294901760
    %v1266 = vsub.f32 %v954, %v1265
    %1267 = vmatpush1.msra.mxu0 %v1266
    %v1268 = vand.u32 %v957, 4294901760
    %v1269 = vsub.f32 %v957, %v1268
    %1270 = vmatprep.subr.mxu0 %v1269
    %v1271 = vand.u32 %v956, 4294901760
    %v1272 = vsub.f32 %v956, %v1271
    %1273 = vmatpush1.msra.mxu0 %v1272
    %v1274 = vand.u32 %v959, 4294901760
    %v1275 = vsub.f32 %v959, %v1274
    %1276 = vmatprep.subr.mxu0 %v1275
    %v1277 = vand.u32 %v958, 4294901760
    %v1278 = vsub.f32 %v958, %v1277
    %1279 = vmatpush1.msra.mxu0 %v1278
    %1280 = vmatprep.subr.mxu0 0.0
    %1281 = vmatpush1.msra.mxu0 0.0
    %1282 = vmatprep.subr.mxu0 0.0
    %1283 = vmatpush1.msra.mxu0 0.0
    %1284 = vmatprep.subr.mxu0 0.0
    %1285 = vmatpush1.msra.mxu0 0.0
    %1286 = vmatprep.subr.mxu0 0.0
    %1287 = vmatpush1.msra.mxu0 0.0
    %1288 = vmatprep.subr.mxu0 0.0
    %1289 = vmatpush1.msra.mxu0 0.0
    %1290 = vmatprep.subr.mxu0 0.0
    %1291 = vmatpush1.msra.mxu0 0.0
    %1292 = vmatprep.subr.mxu0 0.0
    %1293 = vmatpush1.msra.mxu0 0.0
    %1294 = vmatprep.subr.mxu0 0.0
    %1295 = vmatpush1.msra.mxu0 0.0
    %1296 = vmatprep.subr.mxu0 0.0
    %1297 = vmatpush1.msra.mxu0 0.0
    %1298 = vmatprep.subr.mxu0 0.0
    %1299 = vmatpush1.msra.mxu0 0.0
    %1300 = vmatprep.subr.mxu0 0.0
    %1301 = vmatpush1.msra.mxu0 0.0
    %1302 = vmatprep.subr.mxu0 0.0
    %1303 = vmatpush1.msra.mxu0 0.0
    %1304 = vmatprep.subr.mxu0 0.0
    %1305 = vmatpush1.msra.mxu0 0.0
    %1306 = vmatprep.subr.mxu0 0.0
    %1307 = vmatpush1.msra.mxu0 0.0
    %1308 = vmatprep.subr.mxu0 0.0
    %1309 = vmatpush1.msra.mxu0 0.0
    %1310 = vmatprep.subr.mxu0 0.0
    %1311 = vmatpush1.msra.mxu0 0.0
    %1312 = vmatprep.subr.mxu0 0.0
    %1313 = vmatpush1.msra.mxu0 0.0
    %1314 = vmatprep.subr.mxu0 0.0
    %1315 = vmatpush1.msra.mxu0 0.0
    %1316 = vmatprep.subr.mxu0 0.0
    %1317 = vmatpush1.msra.mxu0 0.0
    %1318 = vmatprep.subr.mxu0 0.0
    %1319 = vmatpush1.msra.mxu0 0.0
    %1320 = vmatprep.subr.mxu0 0.0
    %1321 = vmatpush1.msra.mxu0 0.0
    %1322 = vmatprep.subr.mxu0 0.0
    %1323 = vmatpush1.msra.mxu0 0.0
    %1324 = vmatprep.subr.mxu0 0.0
    %1325 = vmatpush1.msra.mxu0 0.0
    %1326 = vmatprep.mubr.f32.mxu0 0.0
    %v1327 = vand.u32 %v968, 4294901760
    %v1328 = vsub.f32 %v968, %v1327
    %1329 = vmatmul.mubr.f32.gmra.mrb[0].mxu0 %v1328
    %v1330 = vpop.f32.mrb[0].mxu0
    %v1331 = vadd.f32 %v1222, %v1330
    %v1332 = vpop.f32.mrb[0].mxu0
    %v1333 = vadd.f32 %v1224, %v1332
    %1334 = vdwg.mxu0
    %v1335 = vand.u32 %v943, 4294901760
    %1336 = vmatprep.subr.mxu0 %v1335
    %v1337 = vand.u32 %v942, 4294901760
    %1338 = vmatpush1.msra.mxu0 %v1337
    %v1339 = vand.u32 %v945, 4294901760
    %1340 = vmatprep.subr.mxu0 %v1339
    %v1341 = vand.u32 %v944, 4294901760
    %1342 = vmatpush1.msra.mxu0 %v1341
    %v1343 = vand.u32 %v947, 4294901760
    %1344 = vmatprep.subr.mxu0 %v1343
    %v1345 = vand.u32 %v946, 4294901760
    %1346 = vmatpush1.msra.mxu0 %v1345
    %v1347 = vand.u32 %v949, 4294901760
    %1348 = vmatprep.subr.mxu0 %v1347
    %v1349 = vand.u32 %v948, 4294901760
    %1350 = vmatpush1.msra.mxu0 %v1349
    %v1351 = vand.u32 %v951, 4294901760
    %1352 = vmatprep.subr.mxu0 %v1351
    %v1353 = vand.u32 %v950, 4294901760
    %1354 = vmatpush1.msra.mxu0 %v1353
    %v1355 = vand.u32 %v953, 4294901760
    %1356 = vmatprep.subr.mxu0 %v1355
    %v1357 = vand.u32 %v952, 4294901760
    %1358 = vmatpush1.msra.mxu0 %v1357
    %v1359 = vand.u32 %v955, 4294901760
    %1360 = vmatprep.subr.mxu0 %v1359
    %v1361 = vand.u32 %v954, 4294901760
    %1362 = vmatpush1.msra.mxu0 %v1361
    %v1363 = vand.u32 %v957, 4294901760
    %1364 = vmatprep.subr.mxu0 %v1363
    %v1365 = vand.u32 %v956, 4294901760
    %1366 = vmatpush1.msra.mxu0 %v1365
    %v1367 = vand.u32 %v959, 4294901760
    %1368 = vmatprep.subr.mxu0 %v1367
    %v1369 = vand.u32 %v958, 4294901760
    %1370 = vmatpush1.msra.mxu0 %v1369
    %1371 = vmatprep.subr.mxu0 0.0
    %1372 = vmatpush1.msra.mxu0 0.0
    %1373 = vmatprep.subr.mxu0 0.0
    %1374 = vmatpush1.msra.mxu0 0.0
    %1375 = vmatprep.subr.mxu0 0.0
    %1376 = vmatpush1.msra.mxu0 0.0
    %1377 = vmatprep.subr.mxu0 0.0
    %1378 = vmatpush1.msra.mxu0 0.0
    %1379 = vmatprep.subr.mxu0 0.0
    %1380 = vmatpush1.msra.mxu0 0.0
    %1381 = vmatprep.subr.mxu0 0.0
    %1382 = vmatpush1.msra.mxu0 0.0
    %1383 = vmatprep.subr.mxu0 0.0
    %1384 = vmatpush1.msra.mxu0 0.0
    %1385 = vmatprep.subr.mxu0 0.0
    %1386 = vmatpush1.msra.mxu0 0.0
    %1387 = vmatprep.subr.mxu0 0.0
    %1388 = vmatpush1.msra.mxu0 0.0
    %1389 = vmatprep.subr.mxu0 0.0
    %1390 = vmatpush1.msra.mxu0 0.0
    %1391 = vmatprep.subr.mxu0 0.0
    %1392 = vmatpush1.msra.mxu0 0.0
    %1393 = vmatprep.subr.mxu0 0.0
    %1394 = vmatpush1.msra.mxu0 0.0
    %1395 = vmatprep.subr.mxu0 0.0
    %1396 = vmatpush1.msra.mxu0 0.0
    %1397 = vmatprep.subr.mxu0 0.0
    %1398 = vmatpush1.msra.mxu0 0.0
    %1399 = vmatprep.subr.mxu0 0.0
    %1400 = vmatpush1.msra.mxu0 0.0
    %1401 = vmatprep.subr.mxu0 0.0
    %1402 = vmatpush1.msra.mxu0 0.0
    %1403 = vmatprep.subr.mxu0 0.0
    %1404 = vmatpush1.msra.mxu0 0.0
    %1405 = vmatprep.subr.mxu0 0.0
    %1406 = vmatpush1.msra.mxu0 0.0
    %1407 = vmatprep.subr.mxu0 0.0
    %1408 = vmatpush1.msra.mxu0 0.0
    %1409 = vmatprep.subr.mxu0 0.0
    %1410 = vmatpush1.msra.mxu0 0.0
    %1411 = vmatprep.subr.mxu0 0.0
    %1412 = vmatpush1.msra.mxu0 0.0
    %1413 = vmatprep.subr.mxu0 0.0
    %1414 = vmatpush1.msra.mxu0 0.0
    %1415 = vmatprep.subr.mxu0 0.0
    %1416 = vmatpush1.msra.mxu0 0.0
    %1417 = vmatprep.mubr.f32.mxu0 0.0
    %v1418 = vand.u32 %v968, 4294901760
    %v1419 = vsub.f32 %v968, %v1418
    %v1420 = vand.u32 %v1419, 4294901760
    %1421 = vmatmul.mubr.f32.gmra.mrb[0].mxu0 %v1420
    %v1422 = vpop.f32.mrb[0].mxu0
    %v1423 = vadd.f32 %v1331, %v1422
    %v1424 = vpop.f32.mrb[0].mxu0
    %v1425 = vadd.f32 %v1333, %v1424
    %1426 = vdwg.mxu0
    %v1427 = vand.u32 %v943, 4294901760
    %v1428 = vsub.f32 %v943, %v1427
    %v1429 = vand.u32 %v1428, 4294901760
    %1430 = vmatprep.subr.mxu0 %v1429
    %v1431 = vand.u32 %v942, 4294901760
    %v1432 = vsub.f32 %v942, %v1431
    %v1433 = vand.u32 %v1432, 4294901760
    %1434 = vmatpush1.msra.mxu0 %v1433
    %v1435 = vand.u32 %v945, 4294901760
    %v1436 = vsub.f32 %v945, %v1435
    %v1437 = vand.u32 %v1436, 4294901760
    %1438 = vmatprep.subr.mxu0 %v1437
    %v1439 = vand.u32 %v944, 4294901760
    %v1440 = vsub.f32 %v944, %v1439
    %v1441 = vand.u32 %v1440, 4294901760
    %1442 = vmatpush1.msra.mxu0 %v1441
    %v1443 = vand.u32 %v947, 4294901760
    %v1444 = vsub.f32 %v947, %v1443
    %v1445 = vand.u32 %v1444, 4294901760
    %1446 = vmatprep.subr.mxu0 %v1445
    %v1447 = vand.u32 %v946, 4294901760
    %v1448 = vsub.f32 %v946, %v1447
    %v1449 = vand.u32 %v1448, 4294901760
    %1450 = vmatpush1.msra.mxu0 %v1449
    %v1451 = vand.u32 %v949, 4294901760
    %v1452 = vsub.f32 %v949, %v1451
    %v1453 = vand.u32 %v1452, 4294901760
    %1454 = vmatprep.subr.mxu0 %v1453
    %v1455 = vand.u32 %v948, 4294901760
    %v1456 = vsub.f32 %v948, %v1455
    %v1457 = vand.u32 %v1456, 4294901760
    %1458 = vmatpush1.msra.mxu0 %v1457
    %v1459 = vand.u32 %v951, 4294901760
    %v1460 = vsub.f32 %v951, %v1459
    %v1461 = vand.u32 %v1460, 4294901760
    %1462 = vmatprep.subr.mxu0 %v1461
    %v1463 = vand.u32 %v950, 4294901760
    %v1464 = vsub.f32 %v950, %v1463
    %v1465 = vand.u32 %v1464, 4294901760
    %1466 = vmatpush1.msra.mxu0 %v1465
    %v1467 = vand.u32 %v953, 4294901760
    %v1468 = vsub.f32 %v953, %v1467
    %v1469 = vand.u32 %v1468, 4294901760
    %1470 = vmatprep.subr.mxu0 %v1469
    %v1471 = vand.u32 %v952, 4294901760
    %v1472 = vsub.f32 %v952, %v1471
    %v1473 = vand.u32 %v1472, 4294901760
    %1474 = vmatpush1.msra.mxu0 %v1473
    %v1475 = vand.u32 %v955, 4294901760
    %v1476 = vsub.f32 %v955, %v1475
    %v1477 = vand.u32 %v1476, 4294901760
    %1478 = vmatprep.subr.mxu0 %v1477
    %v1479 = vand.u32 %v954, 4294901760
    %v1480 = vsub.f32 %v954, %v1479
    %v1481 = vand.u32 %v1480, 4294901760
    %1482 = vmatpush1.msra.mxu0 %v1481
    %v1483 = vand.u32 %v957, 4294901760
    %v1484 = vsub.f32 %v957, %v1483
    %v1485 = vand.u32 %v1484, 4294901760
    %1486 = vmatprep.subr.mxu0 %v1485
    %v1487 = vand.u32 %v956, 4294901760
    %v1488 = vsub.f32 %v956, %v1487
    %v1489 = vand.u32 %v1488, 4294901760
    %1490 = vmatpush1.msra.mxu0 %v1489
    %v1491 = vand.u32 %v959, 4294901760
    %v1492 = vsub.f32 %v959, %v1491
    %v1493 = vand.u32 %v1492, 4294901760
    %1494 = vmatprep.subr.mxu0 %v1493
    %v1495 = vand.u32 %v958, 4294901760
    %v1496 = vsub.f32 %v958, %v1495
    %v1497 = vand.u32 %v1496, 4294901760
    %1498 = vmatpush1.msra.mxu0 %v1497
    %1499 = vmatprep.subr.mxu0 0.0
    %1500 = vmatpush1.msra.mxu0 0.0
    %1501 = vmatprep.subr.mxu0 0.0
    %1502 = vmatpush1.msra.mxu0 0.0
    %1503 = vmatprep.subr.mxu0 0.0
    %1504 = vmatpush1.msra.mxu0 0.0
    %1505 = vmatprep.subr.mxu0 0.0
    %1506 = vmatpush1.msra.mxu0 0.0
    %1507 = vmatprep.subr.mxu0 0.0
    %1508 = vmatpush1.msra.mxu0 0.0
    %1509 = vmatprep.subr.mxu0 0.0
    %1510 = vmatpush1.msra.mxu0 0.0
    %1511 = vmatprep.subr.mxu0 0.0
    %1512 = vmatpush1.msra.mxu0 0.0
    %1513 = vmatprep.subr.mxu0 0.0
    %1514 = vmatpush1.msra.mxu0 0.0
    %1515 = vmatprep.subr.mxu0 0.0
    %1516 = vmatpush1.msra.mxu0 0.0
    %1517 = vmatprep.subr.mxu0 0.0
    %1518 = vmatpush1.msra.mxu0 0.0
    %1519 = vmatprep.subr.mxu0 0.0
    %1520 = vmatpush1.msra.mxu0 0.0
    %1521 = vmatprep.subr.mxu0 0.0
    %1522 = vmatpush1.msra.mxu0 0.0
    %1523 = vmatprep.subr.mxu0 0.0
    %1524 = vmatpush1.msra.mxu0 0.0
    %1525 = vmatprep.subr.mxu0 0.0
    %1526 = vmatpush1.msra.mxu0 0.0
    %1527 = vmatprep.subr.mxu0 0.0
    %1528 = vmatpush1.msra.mxu0 0.0
    %1529 = vmatprep.subr.mxu0 0.0
    %1530 = vmatpush1.msra.mxu0 0.0
    %1531 = vmatprep.subr.mxu0 0.0
    %1532 = vmatpush1.msra.mxu0 0.0
    %1533 = vmatprep.subr.mxu0 0.0
    %1534 = vmatpush1.msra.mxu0 0.0
    %1535 = vmatprep.subr.mxu0 0.0
    %1536 = vmatpush1.msra.mxu0 0.0
    %1537 = vmatprep.subr.mxu0 0.0
    %1538 = vmatpush1.msra.mxu0 0.0
    %1539 = vmatprep.subr.mxu0 0.0
    %1540 = vmatpush1.msra.mxu0 0.0
    %1541 = vmatprep.subr.mxu0 0.0
    %1542 = vmatpush1.msra.mxu0 0.0
    %1543 = vmatprep.subr.mxu0 0.0
    %1544 = vmatpush1.msra.mxu0 0.0
    %1545 = vmatprep.mubr.f32.mxu0 0.0
    %v1546 = vand.u32 %v968, 4294901760
    %1547 = vmatmul.mubr.f32.gmra.mrb[0].mxu0 %v1546
    %v1548 = vpop.f32.mrb[0].mxu0
    %v1549 = vadd.f32 %v1423, %v1548
    %v1550 = vpop.f32.mrb[0].mxu0
    %v1551 = vadd.f32 %v1425, %v1550
    %1552 = vdwg.mxu0
    %v1553 = vand.u32 %v943, 4294901760
    %1554 = vmatprep.subr.mxu0 %v1553
    %v1555 = vand.u32 %v942, 4294901760
    %1556 = vmatpush1.msra.mxu0 %v1555
    %v1557 = vand.u32 %v945, 4294901760
    %1558 = vmatprep.subr.mxu0 %v1557
    %v1559 = vand.u32 %v944, 4294901760
    %1560 = vmatpush1.msra.mxu0 %v1559
    %v1561 = vand.u32 %v947, 4294901760
    %1562 = vmatprep.subr.mxu0 %v1561
    %v1563 = vand.u32 %v946, 4294901760
    %1564 = vmatpush1.msra.mxu0 %v1563
    %v1565 = vand.u32 %v949, 4294901760
    %1566 = vmatprep.subr.mxu0 %v1565
    %v1567 = vand.u32 %v948, 4294901760
    %1568 = vmatpush1.msra.mxu0 %v1567
    %v1569 = vand.u32 %v951, 4294901760
    %1570 = vmatprep.subr.mxu0 %v1569
    %v1571 = vand.u32 %v950, 4294901760
    %1572 = vmatpush1.msra.mxu0 %v1571
    %v1573 = vand.u32 %v953, 4294901760
    %1574 = vmatprep.subr.mxu0 %v1573
    %v1575 = vand.u32 %v952, 4294901760
    %1576 = vmatpush1.msra.mxu0 %v1575
    %v1577 = vand.u32 %v955, 4294901760
    %1578 = vmatprep.subr.mxu0 %v1577
    %v1579 = vand.u32 %v954, 4294901760
    %1580 = vmatpush1.msra.mxu0 %v1579
    %v1581 = vand.u32 %v957, 4294901760
    %1582 = vmatprep.subr.mxu0 %v1581
    %v1583 = vand.u32 %v956, 4294901760
    %1584 = vmatpush1.msra.mxu0 %v1583
    %v1585 = vand.u32 %v959, 4294901760
    %1586 = vmatprep.subr.mxu0 %v1585
    %v1587 = vand.u32 %v958, 4294901760
    %1588 = vmatpush1.msra.mxu0 %v1587
    %1589 = vmatprep.subr.mxu0 0.0
    %1590 = vmatpush1.msra.mxu0 0.0
    %1591 = vmatprep.subr.mxu0 0.0
    %1592 = vmatpush1.msra.mxu0 0.0
    %1593 = vmatprep.subr.mxu0 0.0
    %1594 = vmatpush1.msra.mxu0 0.0
    %1595 = vmatprep.subr.mxu0 0.0
    %1596 = vmatpush1.msra.mxu0 0.0
    %1597 = vmatprep.subr.mxu0 0.0
    %1598 = vmatpush1.msra.mxu0 0.0
    %1599 = vmatprep.subr.mxu0 0.0
    %1600 = vmatpush1.msra.mxu0 0.0
    %1601 = vmatprep.subr.mxu0 0.0
    %1602 = vmatpush1.msra.mxu0 0.0
    %1603 = vmatprep.subr.mxu0 0.0
    %1604 = vmatpush1.msra.mxu0 0.0
    %1605 = vmatprep.subr.mxu0 0.0
    %1606 = vmatpush1.msra.mxu0 0.0
    %1607 = vmatprep.subr.mxu0 0.0
    %1608 = vmatpush1.msra.mxu0 0.0
    %1609 = vmatprep.subr.mxu0 0.0
    %1610 = vmatpush1.msra.mxu0 0.0
    %1611 = vmatprep.subr.mxu0 0.0
    %1612 = vmatpush1.msra.mxu0 0.0
    %1613 = vmatprep.subr.mxu0 0.0
    %1614 = vmatpush1.msra.mxu0 0.0
    %1615 = vmatprep.subr.mxu0 0.0
    %1616 = vmatpush1.msra.mxu0 0.0
    %1617 = vmatprep.subr.mxu0 0.0
    %1618 = vmatpush1.msra.mxu0 0.0
    %1619 = vmatprep.subr.mxu0 0.0
    %1620 = vmatpush1.msra.mxu0 0.0
    %1621 = vmatprep.subr.mxu0 0.0
    %1622 = vmatpush1.msra.mxu0 0.0
    %1623 = vmatprep.subr.mxu0 0.0
    %1624 = vmatpush1.msra.mxu0 0.0
    %1625 = vmatprep.subr.mxu0 0.0
    %1626 = vmatpush1.msra.mxu0 0.0
    %1627 = vmatprep.subr.mxu0 0.0
    %1628 = vmatpush1.msra.mxu0 0.0
    %1629 = vmatprep.subr.mxu0 0.0
    %1630 = vmatpush1.msra.mxu0 0.0
    %1631 = vmatprep.subr.mxu0 0.0
    %1632 = vmatpush1.msra.mxu0 0.0
    %1633 = vmatprep.subr.mxu0 0.0
    %1634 = vmatpush1.msra.mxu0 0.0
    %1635 = vmatprep.mubr.f32.mxu0 0.0
    %v1636 = vand.u32 %v968, 4294901760
    %1637 = vmatmul.mubr.f32.gmra.mrb[0].mxu0 %v1636
    %v1638 = vpop.f32.mrb[0].mxu0
    %v1639 = vadd.f32 %v1549, %v1638
    %v1640 = vpop.f32.mrb[0].mxu0
    %v1641 = vadd.f32 %v1551, %v1640
    %1642 = vdwg.mxu0
    %v1643 = vadd.f32 %v58, %v1639
    %v1644 = vadd.f32 %v59, %v1641
    %vm1645 = vcmp.ge.f32.partialorder %v1643, 0.0
    %vm1646 = vcmp.ge.f32.partialorder %v1644, 0.0
    %v1647 = vmul.f32 %v1643, 0.01
    %v1648 = vmul.f32 %v1644, 0.01
    %v1649 = vsel %vm1645, %v1643, %v1647
    %v1650 = vsel %vm1646, %v1644, %v1648
    %1651 = vst [vmem:[#allocation6] sm:$0xff] %v1649
    %1652 = vst [vmem:[#allocation6 + $0x8] sm:$0xff] %v1650
    // Predicated region
    $region18: #{tpu_custom_call.1} parent=1 // pred_check
      _
    $region19: #{tpu_custom_call.1} parent=1 // pred_check_branch
      %1654 = sbr.rel (0) target = $region21
    $region20: #{tpu_custom_call.1} parent=1 // pred_region
      %s1656 = ssub.s32 256, 256
      %1657 = vsyncadd [#allocation5], %s1656
      %s1659 = sshll.u32 [#allocation6], 4
      %s1660 = int_to_ptr.vmem [resolvable:$true] %s1659
      %1662 = dma.vmem_to_hbm [thread:$0]  %s1660, 256, %s3, [#allocation5]
    $region21: #{tpu_custom_call.1} parent=1 // pred_fallthru
      _
    // Predicated region
    $region22: #{tpu_custom_call.1} parent=1 // pred_check
      _
    $region23: #{tpu_custom_call.1} parent=1 // pred_check_branch
      %1664 = sbr.rel (0) target = $region25
    $region24: #{tpu_custom_call.1} parent=1 // pred_region
      %1665 = dma.done [#allocation5], 256
    $region25: #{tpu_custom_call.1} parent=1 // pred_fallthru
      _
    %1666 = vsyncpa [#allocation4], 1
    %1667 = vsyncpa [#allocation5], 1

</llo_original>
